<compile_context>
chip_gen: v7x
topology: tpu7x:2x2x1
jax: 0.10.0
libtpu: 0.0.40
codegen_flags: <defaults>
</compile_context>

<pallas_src>
import jax
import jax.numpy as jnp
from jax.experimental import pallas as pl
from jax.experimental.pallas import tpu as pltpu

# ---------------------------------------------------------------------------
# Model sizes (small, consistent with the module's layer_size dict semantics)
# ---------------------------------------------------------------------------
B = 8            # batch (8 fills the f32 sublanes of a vreg)
IN = 20          # layer_size['in']
OUT = 4          # layer_size['out']  (position dims)
SENS = IN - OUT  # sensor dims = 16
IO = 32          # layer_size['io']
CF = 32          # layer_size['cf']
CS = 16          # layer_size['cs']
HID = 100        # attention hidden width (Cell(sensor_dims, 100, ...))
PACK = 128       # packed state width: [io | cf | cs | zero-pad]  (<=1 MXU tile)

TAU_IO = 2.0
TAU_CF = 5.0
TAU_CS = 70.0


# ---------------------------------------------------------------------------
# Pallas kernel: whole sequence. grid=(T,), weights resident, state in scratch.
# ---------------------------------------------------------------------------
def _gated_mtrnn_seq_kernel(
    # inputs
    mix_ref,                       # SMEM (T,) f32 : per-step blend factor
    x_ref,                         # VMEM (1, B, IN) : current step input
    prev0_ref,                     # VMEM (B, OUT)   : initial last_output
    u0_ref,                        # VMEM (B, PACK)  : initial packed state
    wa1_ref, ba1_ref, wa2_ref, ba2_ref, wa3_ref, ba3_ref,   # attention MLP
    wpos_ref, wsens_ref, wh_ref, bpack_ref, invtau_ref,     # fused MTRNN
    wo_ref, bo_ref,                                         # output head
    # outputs
    y_ref,                         # (1, B, OUT)  per-step output
    attn_ref,                      # (1, B, SENS) per-step attention map
    ufin_ref,                      # (B, PACK)    final packed state
    # scratch (persist across grid steps)
    u_sc,                          # (B, PACK) f32 : packed state carry
    prev_sc,                       # (B, OUT)  f32 : previous output carry
):
  t = pl.program_id(0)
  f32 = jnp.float32
  bf16 = jnp.bfloat16

  @pl.when(t == 0)
  def _init():
    u_sc[...] = u0_ref[...]
    prev_sc[...] = prev0_ref[...]

  x = x_ref[0]                     # (B, IN)
  pos = x[:, :OUT]
  sens = x[:, OUT:]

  # open-rate blend with previous output (mix == 1.0 exactly reproduces the
  # "last_output is None" path).
  mix = mix_ref[t]
  pos_mixed = mix * pos + (1.0 - mix) * prev_sc[...]

  # ---- attention MLP on raw sensors: sigmoid -> sigmoid -> softmax ----
  h1 = jax.nn.sigmoid(
      jnp.dot(sens.astype(bf16), wa1_ref[...], preferred_element_type=f32)
      + ba1_ref[...])
  h2 = jax.nn.sigmoid(
      jnp.dot(h1.astype(bf16), wa2_ref[...], preferred_element_type=f32)
      + ba2_ref[...])
  logits = (jnp.dot(h2.astype(bf16), wa3_ref[...], preferred_element_type=f32)
            + ba3_ref[...])
  logits = logits - jnp.max(logits, axis=-1, keepdims=True)
  e = jnp.exp(logits)
  attn = e * pl.reciprocal(jnp.sum(e, axis=-1, keepdims=True), approx=True)
  attn_ref[0] = attn

  sens_g = sens * attn

  # ---- fused MTRNN step over the packed [io|cf|cs|pad] axis ----
  u = u_sc[...]
  h = jnp.tanh(u)                  # pad lanes are tanh(0)=0; weight rows are 0
  pre = (jnp.dot(pos_mixed.astype(bf16), wpos_ref[...], preferred_element_type=f32)
         + jnp.dot(sens_g.astype(bf16), wsens_ref[...], preferred_element_type=f32)
         + jnp.dot(h.astype(bf16), wh_ref[...], preferred_element_type=f32)
         + bpack_ref[...])
  inv_tau = invtau_ref[...]        # (1, PACK); 0 in the pad lanes
  u_new = (1.0 - inv_tau) * u + inv_tau * pre

  # output head (W_out rows beyond the io block are zero)
  y = jnp.tanh(
      jnp.dot(jnp.tanh(u_new).astype(bf16), wo_ref[...],
              preferred_element_type=f32)
      + bo_ref[...])

  y_ref[0] = y
  u_sc[...] = u_new
  prev_sc[...] = y

  @pl.when(t == pl.num_programs(0) - 1)
  def _fin():
    ufin_ref[...] = u_new


# ---------------------------------------------------------------------------
# Wrapper
# ---------------------------------------------------------------------------
_PACKED_ORDER = ("wa1", "ba1", "wa2", "ba2", "wa3", "ba3",
                 "w_pos", "w_sens", "w_h", "b_pack", "inv_tau",
                 "w_out", "b_out")


def _const_spec(shape):
  nd = len(shape)
  return pl.BlockSpec(shape, lambda t, _n=nd: (0,) * _n)


@jax.jit
def _run_seq(x_seq, mix_seq, prev0, u0, params):
  T, b, _ = x_seq.shape
  weight_args = [params[k] for k in _PACKED_ORDER]

  in_specs = [
      pl.BlockSpec(memory_space=pltpu.MemorySpace.SMEM),        # mix_seq (T,)
      pl.BlockSpec((1, b, IN), lambda t: (t, 0, 0)),            # x per step
      _const_spec((b, OUT)),                                    # prev0
      _const_spec((b, PACK)),                                   # u0
  ] + [_const_spec(tuple(params[k].shape)) for k in _PACKED_ORDER]

  out_specs = (
      pl.BlockSpec((1, b, OUT), lambda t: (t, 0, 0)),           # y per step
      pl.BlockSpec((1, b, SENS), lambda t: (t, 0, 0)),          # attn per step
      _const_spec((b, PACK)),                                   # final state
  )
  out_shape = (
      jax.ShapeDtypeStruct((T, b, OUT), jnp.float32),
      jax.ShapeDtypeStruct((T, b, SENS), jnp.float32),
      jax.ShapeDtypeStruct((b, PACK), jnp.float32),
  )

  fn = pl.pallas_call(
      _gated_mtrnn_seq_kernel,
      grid=(T,),
      in_specs=in_specs,
      out_specs=out_specs,
      out_shape=out_shape,
      scratch_shapes=[pltpu.VMEM((b, PACK), jnp.float32),
                      pltpu.VMEM((b, OUT), jnp.float32)],
      input_output_aliases={3: 2},   # initial packed state -> final packed state
      compiler_params=pltpu.CompilerParams(
          dimension_semantics=("arbitrary",)),
  )
  return fn(mix_seq, x_seq, prev0, u0, *weight_args)


def gated_mtrnn_forward_seq(x_seq, state, params, last_output=None,
                            open_rate=1.0):
  """Run T GatedMTRNN steps.  Returns (y_seq, attention_maps, new_state)."""
  T, b, _ = x_seq.shape
  orate = jnp.float32(open_rate)
  mix_seq = jnp.full((T,), orate, jnp.float32)
  if last_output is None:
    mix_seq = mix_seq.at[0].set(jnp.float32(1.0))   # first step: no blending
    prev0 = jnp.zeros((b, OUT), jnp.float32)
  else:
    prev0 = last_output.astype(jnp.float32)
  return _run_seq(x_seq, mix_seq, prev0, state, params)


# ---------------------------------------------------------------------------
# Deterministic parameter init + host-side packing
# ---------------------------------------------------------------------------
def init_raw_params(key):
  shapes = {
      # attention MLP (Cell = Linear + activation), weights stored (in, out)
      "wa1": (SENS, HID), "ba1": (1, HID),
      "wa2": (HID, HID), "ba2": (1, HID),
      "wa3": (HID, SENS), "ba3": (1, SENS),
      # MTRNN (weights stored (in, out))
      "wxi_p": (OUT, IO), "wxi_s": (SENS, IO), "wii": (IO, IO),
      "wfi": (CF, IO), "bi": (1, IO),
      "wif": (IO, CF), "wff": (CF, CF), "wsf": (CS, CF), "bf": (1, CF),
      "wfs": (CF, CS), "wss": (CS, CS), "bs": (1, CS),
      "wo": (IO, OUT), "bo": (1, OUT),
  }
  params = {}
  keys = jax.random.split(key, len(shapes))
  for k, (name, shp) in zip(keys, sorted(shapes.items())):
    fan_in = shp[0] if shp[0] > 1 else shp[1]
    params[name] = (jax.random.normal(k, shp, jnp.float32)
                    / jnp.sqrt(jnp.float32(fan_in)))
  return params


def pack_params(raw, weight_dtype=jnp.bfloat16):
  """Pack raw per-connection weights into fused MXU-friendly buffers."""
  z = jnp.zeros
  # x -> packed pre-activation
  w_pos = z((OUT, PACK), jnp.float32).at[:, :IO].set(raw["wxi_p"])
  w_sens = z((SENS, PACK), jnp.float32).at[:, :IO].set(raw["wxi_s"])
  # tanh(u_pack) -> packed pre-activation (zeros where no connection exists)
  w_h = z((PACK, PACK), jnp.float32)
  w_h = w_h.at[:IO, :IO].set(raw["wii"])
  w_h = w_h.at[:IO, IO:IO + CF].set(raw["wif"])
  w_h = w_h.at[IO:IO + CF, :IO].set(raw["wfi"])
  w_h = w_h.at[IO:IO + CF, IO:IO + CF].set(raw["wff"])
  w_h = w_h.at[IO:IO + CF, IO + CF:IO + CF + CS].set(raw["wfs"])
  w_h = w_h.at[IO + CF:IO + CF + CS, IO:IO + CF].set(raw["wsf"])
  w_h = w_h.at[IO + CF:IO + CF + CS, IO + CF:IO + CF + CS].set(raw["wss"])
  # packed bias and 1/tau rows
  b_pack = z((1, PACK), jnp.float32)
  b_pack = b_pack.at[:, :IO].set(raw["bi"])
  b_pack = b_pack.at[:, IO:IO + CF].set(raw["bf"])
  b_pack = b_pack.at[:, IO + CF:IO + CF + CS].set(raw["bs"])
  inv_tau = z((1, PACK), jnp.float32)
  inv_tau = inv_tau.at[:, :IO].set(1.0 / TAU_IO)
  inv_tau = inv_tau.at[:, IO:IO + CF].set(1.0 / TAU_CF)
  inv_tau = inv_tau.at[:, IO + CF:IO + CF + CS].set(1.0 / TAU_CS)
  # output head, padded to the packed width
  w_out = z((PACK, OUT), jnp.float32).at[:IO, :].set(raw["wo"])

  wd = weight_dtype
  return {
      "wa1": raw["wa1"].astype(wd), "ba1": raw["ba1"],
      "wa2": raw["wa2"].astype(wd), "ba2": raw["ba2"],
      "wa3": raw["wa3"].astype(wd), "ba3": raw["ba3"],
      "w_pos": w_pos.astype(wd), "w_sens": w_sens.astype(wd),
      "w_h": w_h.astype(wd), "b_pack": b_pack, "inv_tau": inv_tau,
      "w_out": w_out.astype(wd), "b_out": raw["bo"],
  }


def init_state(batch_size):
  """Packed MTRNN state: [u_io | u_cf | u_cs | zero-pad] per row."""
  return jnp.zeros((batch_size, PACK), jnp.float32)


# ---------------------------------------------------------------------------
if __name__ == "__main__":
  T = 8
  root = jax.random.PRNGKey(0)
  k_param, k_x1, k_x2 = jax.random.split(root, 3)

  raw = init_raw_params(k_param)
  params = pack_params(raw)
  state = init_state(B)

  x_seq1 = jax.random.normal(k_x1, (T, B, IN), jnp.float32)
  x_seq2 = jax.random.normal(k_x2, (T, B, IN), jnp.float32)

  # sequence 1: mtrnn.last_output is None at t=0 -> no blending on first step
  y1, attn1, state = gated_mtrnn_forward_seq(
      x_seq1, state, params, last_output=None, open_rate=1.0)
  # sequence 2: continue, blending positions with the previous output
  y2, attn2, state = gated_mtrnn_forward_seq(
      x_seq2, state, params, last_output=y1[-1], open_rate=0.5)

  jax.block_until_ready((y1, y2, attn1, attn2, state))
  assert y1.shape == (T, B, OUT) and y2.shape == (T, B, OUT)
  assert attn1.shape == (T, B, SENS) and attn2.shape == (T, B, SENS)
  assert state.shape == (B, PACK)
  # attention_map rows are a softmax -> sum to ~1 (bf16 matmuls + approx recip)
  assert jnp.allclose(jnp.sum(attn1, axis=-1), 1.0, atol=5e-2)
  assert bool(jnp.all(jnp.isfinite(y2)))
  print("KERNEL_OK")
</pallas_src>

<mosaic_0001>
module attributes {stable_mosaic.version = 11 : i64} {
  func.func @_gated_mtrnn_seq_kernel(%arg0: i32, %arg1: memref<8xf32, #tpu.memory_space<smem>>, %arg2: memref<1x8x20xf32, #tpu.memory_space<vmem>>, %arg3: memref<8x4xf32, #tpu.memory_space<vmem>>, %arg4: memref<8x128xf32, #tpu.memory_space<vmem>>, %arg5: memref<16x100xbf16, #tpu.memory_space<vmem>>, %arg6: memref<1x100xf32, #tpu.memory_space<vmem>>, %arg7: memref<100x100xbf16, #tpu.memory_space<vmem>>, %arg8: memref<1x100xf32, #tpu.memory_space<vmem>>, %arg9: memref<100x16xbf16, #tpu.memory_space<vmem>>, %arg10: memref<1x16xf32, #tpu.memory_space<vmem>>, %arg11: memref<4x128xbf16, #tpu.memory_space<vmem>>, %arg12: memref<16x128xbf16, #tpu.memory_space<vmem>>, %arg13: memref<128x128xbf16, #tpu.memory_space<vmem>>, %arg14: memref<1x128xf32, #tpu.memory_space<vmem>>, %arg15: memref<1x128xf32, #tpu.memory_space<vmem>>, %arg16: memref<128x4xbf16, #tpu.memory_space<vmem>>, %arg17: memref<1x4xf32, #tpu.memory_space<vmem>>, %arg18: memref<1x8x4xf32, #tpu.memory_space<vmem>>, %arg19: memref<1x8x16xf32, #tpu.memory_space<vmem>>, %arg20: memref<8x128xf32, #tpu.memory_space<vmem>>, %arg21: memref<8x128xf32, #tpu.memory_space<vmem>>, %arg22: memref<8x4xf32, #tpu.memory_space<vmem>>) attributes {dimension_semantics = [#tpu.dimension_semantics<arbitrary>], iteration_bounds = array<i64: 8>, scalar_prefetch = 0 : i64, scratch_operands = 2 : i64, tpu.core_type = #tpu.core_type<tc>, window_params = [{transform_indices = @transform_0, window_bounds = array<i64: 8>}, {transform_indices = @transform_1, window_bounds = array<i64: 1, 8, 20>}, {pipeline_mode = #tpu.pipeline_mode<synchronous>, transform_indices = @transform_2, window_bounds = array<i64: 8, 4>}, {pipeline_mode = #tpu.pipeline_mode<synchronous>, transform_indices = @transform_3, window_bounds = array<i64: 8, 128>}, {pipeline_mode = #tpu.pipeline_mode<synchronous>, transform_indices = @transform_4, window_bounds = array<i64: 16, 100>}, {pipeline_mode = #tpu.pipeline_mode<synchronous>, transform_indices = @transform_5, window_bounds = array<i64: 1, 100>}, {pipeline_mode = #tpu.pipeline_mode<synchronous>, transform_indices = @transform_6, window_bounds = array<i64: 100, 100>}, {pipeline_mode = #tpu.pipeline_mode<synchronous>, transform_indices = @transform_7, window_bounds = array<i64: 1, 100>}, {pipeline_mode = #tpu.pipeline_mode<synchronous>, transform_indices = @transform_8, window_bounds = array<i64: 100, 16>}, {pipeline_mode = #tpu.pipeline_mode<synchronous>, transform_indices = @transform_9, window_bounds = array<i64: 1, 16>}, {pipeline_mode = #tpu.pipeline_mode<synchronous>, transform_indices = @transform_10, window_bounds = array<i64: 4, 128>}, {pipeline_mode = #tpu.pipeline_mode<synchronous>, transform_indices = @transform_11, window_bounds = array<i64: 16, 128>}, {pipeline_mode = #tpu.pipeline_mode<synchronous>, transform_indices = @transform_12, window_bounds = array<i64: 128, 128>}, {pipeline_mode = #tpu.pipeline_mode<synchronous>, transform_indices = @transform_13, window_bounds = array<i64: 1, 128>}, {pipeline_mode = #tpu.pipeline_mode<synchronous>, transform_indices = @transform_14, window_bounds = array<i64: 1, 128>}, {pipeline_mode = #tpu.pipeline_mode<synchronous>, transform_indices = @transform_15, window_bounds = array<i64: 128, 4>}, {pipeline_mode = #tpu.pipeline_mode<synchronous>, transform_indices = @transform_16, window_bounds = array<i64: 1, 4>}, {transform_indices = @transform_17, window_bounds = array<i64: 1, 8, 4>}, {transform_indices = @transform_18, window_bounds = array<i64: 1, 8, 16>}, {pipeline_mode = #tpu.pipeline_mode<synchronous>, transform_indices = @transform_19, window_bounds = array<i64: 8, 128>}]} {
    %c0_i32 = arith.constant 0 : i32
    %0 = arith.cmpi eq, %arg0, %c0_i32 : i32
    %1 = arith.extui %0 : i1 to i32
    %c0_i32_0 = arith.constant 0 : i32
    %2 = arith.cmpi ne, %1, %c0_i32_0 : i32
    scf.if %2 {
      %c0_56 = arith.constant 0 : index
      %c0_57 = arith.constant 0 : index
      %98 = vector.load %arg4[%c0_56, %c0_57] : memref<8x128xf32, #tpu.memory_space<vmem>>, vector<8x128xf32>
      %c0_58 = arith.constant 0 : index
      %c0_59 = arith.constant 0 : index
      %99 = vector.load %arg21[%c0_58, %c0_59] : memref<8x128xf32, #tpu.memory_space<vmem>>, vector<8x128xf32>
      tpu.vector_store %arg21[%c0_58, %c0_59], %98 {strides = array<i32>} : memref<8x128xf32, #tpu.memory_space<vmem>>, vector<8x128xf32>,
      %c0_60 = arith.constant 0 : index
      %c0_61 = arith.constant 0 : index
      %100 = vector.load %arg3[%c0_60, %c0_61] : memref<8x4xf32, #tpu.memory_space<vmem>>, vector<8x4xf32>
      %c0_62 = arith.constant 0 : index
      %c0_63 = arith.constant 0 : index
      %101 = vector.load %arg22[%c0_62, %c0_63] : memref<8x4xf32, #tpu.memory_space<vmem>>, vector<8x4xf32>
      tpu.vector_store %arg22[%c0_62, %c0_63], %100 {strides = array<i32>} : memref<8x4xf32, #tpu.memory_space<vmem>>, vector<8x4xf32>,
    } else {
    }
    %c0 = arith.constant 0 : index
    %c0_1 = arith.constant 0 : index
    %c0_2 = arith.constant 0 : index
    %3 = vector.load %arg2[%c0, %c0_1, %c0_2] : memref<1x8x20xf32, #tpu.memory_space<vmem>>, vector<1x8x20xf32>
    %4 = vector.shape_cast %3 : vector<1x8x20xf32> to vector<8x20xf32>
    %5 = vector.extract_strided_slice %4 {offsets = [0, 0], sizes = [8, 4], strides = [1, 1]} : vector<8x20xf32> to vector<8x4xf32>
    %6 = vector.extract_strided_slice %4 {offsets = [0, 4], sizes = [8, 16], strides = [1, 1]} : vector<8x20xf32> to vector<8x16xf32>
    %7 = arith.index_cast %arg0 : i32 to index
    %8 = memref.load %arg1[%7] : memref<8xf32, #tpu.memory_space<smem>>
    %9 = vector.broadcast %8 : f32 to vector<8x4xf32>
    %10 = arith.mulf %9, %5 : vector<8x4xf32>
    %cst = arith.constant 1.000000e+00 : f32
    %11 = arith.subf %cst, %8 : f32
    %c0_3 = arith.constant 0 : index
    %c0_4 = arith.constant 0 : index
    %12 = vector.load %arg22[%c0_3, %c0_4] : memref<8x4xf32, #tpu.memory_space<vmem>>, vector<8x4xf32>
    %13 = vector.broadcast %11 : f32 to vector<8x4xf32>
    %14 = arith.mulf %13, %12 : vector<8x4xf32>
    %15 = arith.addf %10, %14 : vector<8x4xf32>
    %16 = arith.truncf %6 : vector<8x16xf32> to vector<8x16xbf16>
    %c0_5 = arith.constant 0 : index
    %c0_6 = arith.constant 0 : index
    %17 = vector.load %arg5[%c0_5, %c0_6] : memref<16x100xbf16, #tpu.memory_space<vmem>>, vector<16x100xbf16>
    %cst_7 = arith.constant dense<0.000000e+00> : vector<8x100xf32>
    %18 = tpu.matmul %16, %17, %cst_7 {dimension_numbers = #tpu.dot_dimension_numbers<[1], [0], [0], [1], [0, 0, 1, 1], [], []>} : vector<8x16xbf16>, vector<16x100xbf16>, vector<8x100xf32> -> vector<8x100xf32>
    %c0_8 = arith.constant 0 : index
    %c0_9 = arith.constant 0 : index
    %19 = vector.load %arg6[%c0_8, %c0_9] : memref<1x100xf32, #tpu.memory_space<vmem>>, vector<1x100xf32>
    %20 = vector.broadcast %19 : vector<1x100xf32> to vector<8x100xf32>
    %21 = arith.addf %18, %20 : vector<8x100xf32>
    %22 = arith.negf %21 : vector<8x100xf32>
    %23 = math.exp %22 : vector<8x100xf32>
    %cst_10 = arith.constant 1.000000e+00 : f32
    %24 = vector.broadcast %cst_10 : f32 to vector<8x100xf32>
    %25 = arith.addf %24, %23 : vector<8x100xf32>
    %26 = arith.divf %24, %25 : vector<8x100xf32>
    %27 = arith.truncf %26 : vector<8x100xf32> to vector<8x100xbf16>
    %c0_11 = arith.constant 0 : index
    %c0_12 = arith.constant 0 : index
    %28 = vector.load %arg7[%c0_11, %c0_12] : memref<100x100xbf16, #tpu.memory_space<vmem>>, vector<100x100xbf16>
    %cst_13 = arith.constant dense<0.000000e+00> : vector<8x100xf32>
    %29 = tpu.matmul %27, %28, %cst_13 {dimension_numbers = #tpu.dot_dimension_numbers<[1], [0], [0], [1], [0, 0, 1, 1], [], []>} : vector<8x100xbf16>, vector<100x100xbf16>, vector<8x100xf32> -> vector<8x100xf32>
    %c0_14 = arith.constant 0 : index
    %c0_15 = arith.constant 0 : index
    %30 = vector.load %arg8[%c0_14, %c0_15] : memref<1x100xf32, #tpu.memory_space<vmem>>, vector<1x100xf32>
    %31 = vector.broadcast %30 : vector<1x100xf32> to vector<8x100xf32>
    %32 = arith.addf %29, %31 : vector<8x100xf32>
    %33 = arith.negf %32 : vector<8x100xf32>
    %34 = math.exp %33 : vector<8x100xf32>
    %cst_16 = arith.constant 1.000000e+00 : f32
    %35 = vector.broadcast %cst_16 : f32 to vector<8x100xf32>
    %36 = arith.addf %35, %34 : vector<8x100xf32>
    %37 = arith.divf %35, %36 : vector<8x100xf32>
    %38 = arith.truncf %37 : vector<8x100xf32> to vector<8x100xbf16>
    %c0_17 = arith.constant 0 : index
    %c0_18 = arith.constant 0 : index
    %39 = vector.load %arg9[%c0_17, %c0_18] : memref<100x16xbf16, #tpu.memory_space<vmem>>, vector<100x16xbf16>
    %cst_19 = arith.constant dense<0.000000e+00> : vector<8x16xf32>
    %40 = tpu.matmul %38, %39, %cst_19 {dimension_numbers = #tpu.dot_dimension_numbers<[1], [0], [0], [1], [0, 0, 1, 1], [], []>} : vector<8x100xbf16>, vector<100x16xbf16>, vector<8x16xf32> -> vector<8x16xf32>
    %c0_20 = arith.constant 0 : index
    %c0_21 = arith.constant 0 : index
    %41 = vector.load %arg10[%c0_20, %c0_21] : memref<1x16xf32, #tpu.memory_space<vmem>>, vector<1x16xf32>
    %42 = vector.broadcast %41 : vector<1x16xf32> to vector<8x16xf32>
    %43 = arith.addf %40, %42 : vector<8x16xf32>
    %cst_22 = arith.constant dense<0xFF800000> : vector<8xf32>
    %44 = vector.multi_reduction <maximumf>, %43, %cst_22 [1] : vector<8x16xf32> to vector<8xf32>
    %45 = vector.shape_cast %44 : vector<8xf32> to vector<8x1xf32>
    %46 = vector.broadcast %45 : vector<8x1xf32> to vector<8x16xf32>
    %47 = arith.subf %43, %46 : vector<8x16xf32>
    %48 = math.exp %47 : vector<8x16xf32>
    %cst_23 = arith.constant dense<0.000000e+00> : vector<8xf32>
    %49 = vector.multi_reduction <add>, %48, %cst_23 [1] : vector<8x16xf32> to vector<8xf32>
    %50 = vector.shape_cast %49 : vector<8xf32> to vector<8x1xf32>
    %51 = tpu.reciprocal %50 {approx = true} : vector<8x1xf32> -> vector<8x1xf32>
    %52 = vector.broadcast %51 : vector<8x1xf32> to vector<8x16xf32>
    %53 = arith.mulf %48, %52 : vector<8x16xf32>
    %c0_24 = arith.constant 0 : index
    %c0_25 = arith.constant 0 : index
    %c0_26 = arith.constant 0 : index
    %54 = vector.load %arg19[%c0_24, %c0_25, %c0_26] : memref<1x8x16xf32, #tpu.memory_space<vmem>>, vector<1x8x16xf32>
    %55 = vector.shape_cast %54 : vector<1x8x16xf32> to vector<8x16xf32>
    %56 = vector.shape_cast %53 : vector<8x16xf32> to vector<1x8x16xf32>
    tpu.vector_store %arg19[%c0_24, %c0_25, %c0_26], %56 {strides = array<i32>} : memref<1x8x16xf32, #tpu.memory_space<vmem>>, vector<1x8x16xf32>,
    %57 = arith.mulf %6, %53 : vector<8x16xf32>
    %c0_27 = arith.constant 0 : index
    %c0_28 = arith.constant 0 : index
    %58 = vector.load %arg21[%c0_27, %c0_28] : memref<8x128xf32, #tpu.memory_space<vmem>>, vector<8x128xf32>
    %59 = math.tanh %58 : vector<8x128xf32>
    %60 = arith.truncf %15 : vector<8x4xf32> to vector<8x4xbf16>
    %c0_29 = arith.constant 0 : index
    %c0_30 = arith.constant 0 : index
    %61 = vector.load %arg11[%c0_29, %c0_30] : memref<4x128xbf16, #tpu.memory_space<vmem>>, vector<4x128xbf16>
    %cst_31 = arith.constant dense<0.000000e+00> : vector<8x128xf32>
    %62 = tpu.matmul %60, %61, %cst_31 {dimension_numbers = #tpu.dot_dimension_numbers<[1], [0], [0], [1], [0, 0, 1, 1], [], []>} : vector<8x4xbf16>, vector<4x128xbf16>, vector<8x128xf32> -> vector<8x128xf32>
    %63 = arith.truncf %57 : vector<8x16xf32> to vector<8x16xbf16>
    %c0_32 = arith.constant 0 : index
    %c0_33 = arith.constant 0 : index
    %64 = vector.load %arg12[%c0_32, %c0_33] : memref<16x128xbf16, #tpu.memory_space<vmem>>, vector<16x128xbf16>
    %cst_34 = arith.constant dense<0.000000e+00> : vector<8x128xf32>
    %65 = tpu.matmul %63, %64, %cst_34 {dimension_numbers = #tpu.dot_dimension_numbers<[1], [0], [0], [1], [0, 0, 1, 1], [], []>} : vector<8x16xbf16>, vector<16x128xbf16>, vector<8x128xf32> -> vector<8x128xf32>
    %66 = arith.addf %62, %65 : vector<8x128xf32>
    %67 = arith.truncf %59 : vector<8x128xf32> to vector<8x128xbf16>
    %c0_35 = arith.constant 0 : index
    %c0_36 = arith.constant 0 : index
    %68 = vector.load %arg13[%c0_35, %c0_36] : memref<128x128xbf16, #tpu.memory_space<vmem>>, vector<128x128xbf16>
    %cst_37 = arith.constant dense<0.000000e+00> : vector<8x128xf32>
    %69 = tpu.matmul %67, %68, %cst_37 {dimension_numbers = #tpu.dot_dimension_numbers<[1], [0], [0], [1], [0, 0, 1, 1], [], []>} : vector<8x128xbf16>, vector<128x128xbf16>, vector<8x128xf32> -> vector<8x128xf32>
    %70 = arith.addf %66, %69 : vector<8x128xf32>
    %c0_38 = arith.constant 0 : index
    %c0_39 = arith.constant 0 : index
    %71 = vector.load %arg14[%c0_38, %c0_39] : memref<1x128xf32, #tpu.memory_space<vmem>>, vector<1x128xf32>
    %72 = vector.broadcast %71 : vector<1x128xf32> to vector<8x128xf32>
    %73 = arith.addf %70, %72 : vector<8x128xf32>
    %c0_40 = arith.constant 0 : index
    %c0_41 = arith.constant 0 : index
    %74 = vector.load %arg15[%c0_40, %c0_41] : memref<1x128xf32, #tpu.memory_space<vmem>>, vector<1x128xf32>
    %cst_42 = arith.constant 1.000000e+00 : f32
    %75 = vector.broadcast %cst_42 : f32 to vector<1x128xf32>
    %76 = arith.subf %75, %74 : vector<1x128xf32>
    %77 = vector.broadcast %76 : vector<1x128xf32> to vector<8x128xf32>
    %78 = arith.mulf %77, %58 : vector<8x128xf32>
    %79 = vector.broadcast %74 : vector<1x128xf32> to vector<8x128xf32>
    %80 = arith.mulf %79, %73 : vector<8x128xf32>
    %81 = arith.addf %78, %80 : vector<8x128xf32>
    %82 = math.tanh %81 : vector<8x128xf32>
    %83 = arith.truncf %82 : vector<8x128xf32> to vector<8x128xbf16>
    %c0_43 = arith.constant 0 : index
    %c0_44 = arith.constant 0 : index
    %84 = vector.load %arg16[%c0_43, %c0_44] : memref<128x4xbf16, #tpu.memory_space<vmem>>, vector<128x4xbf16>
    %cst_45 = arith.constant dense<0.000000e+00> : vector<8x4xf32>
    %85 = tpu.matmul %83, %84, %cst_45 {dimension_numbers = #tpu.dot_dimension_numbers<[1], [0], [0], [1], [0, 0, 1, 1], [], []>} : vector<8x128xbf16>, vector<128x4xbf16>, vector<8x4xf32> -> vector<8x4xf32>
    %c0_46 = arith.constant 0 : index
    %c0_47 = arith.constant 0 : index
    %86 = vector.load %arg17[%c0_46, %c0_47] : memref<1x4xf32, #tpu.memory_space<vmem>>, vector<1x4xf32>
    %87 = vector.broadcast %86 : vector<1x4xf32> to vector<8x4xf32>
    %88 = arith.addf %85, %87 : vector<8x4xf32>
    %89 = math.tanh %88 : vector<8x4xf32>
    %c0_48 = arith.constant 0 : index
    %c0_49 = arith.constant 0 : index
    %c0_50 = arith.constant 0 : index
    %90 = vector.load %arg18[%c0_48, %c0_49, %c0_50] : memref<1x8x4xf32, #tpu.memory_space<vmem>>, vector<1x8x4xf32>
    %91 = vector.shape_cast %90 : vector<1x8x4xf32> to vector<8x4xf32>
    %92 = vector.shape_cast %89 : vector<8x4xf32> to vector<1x8x4xf32>
    tpu.vector_store %arg18[%c0_48, %c0_49, %c0_50], %92 {strides = array<i32>} : memref<1x8x4xf32, #tpu.memory_space<vmem>>, vector<1x8x4xf32>,
    %c0_51 = arith.constant 0 : index
    %c0_52 = arith.constant 0 : index
    %93 = vector.load %arg21[%c0_51, %c0_52] : memref<8x128xf32, #tpu.memory_space<vmem>>, vector<8x128xf32>
    tpu.vector_store %arg21[%c0_51, %c0_52], %81 {strides = array<i32>} : memref<8x128xf32, #tpu.memory_space<vmem>>, vector<8x128xf32>,
    %c0_53 = arith.constant 0 : index
    %c0_54 = arith.constant 0 : index
    %94 = vector.load %arg22[%c0_53, %c0_54] : memref<8x4xf32, #tpu.memory_space<vmem>>, vector<8x4xf32>
    tpu.vector_store %arg22[%c0_53, %c0_54], %89 {strides = array<i32>} : memref<8x4xf32, #tpu.memory_space<vmem>>, vector<8x4xf32>,
    %c7_i32 = arith.constant 7 : i32
    %95 = arith.cmpi eq, %arg0, %c7_i32 : i32
    %96 = arith.extui %95 : i1 to i32
    %c0_i32_55 = arith.constant 0 : i32
    %97 = arith.cmpi ne, %96, %c0_i32_55 : i32
    scf.if %97 {
      %c0_56 = arith.constant 0 : index
      %c0_57 = arith.constant 0 : index
      %98 = vector.load %arg20[%c0_56, %c0_57] : memref<8x128xf32, #tpu.memory_space<vmem>>, vector<8x128xf32>
      tpu.vector_store %arg20[%c0_56, %c0_57], %81 {strides = array<i32>} : memref<8x128xf32, #tpu.memory_space<vmem>>, vector<8x128xf32>,
    } else {
    }
    return
  }
  func.func @transform_0(%arg0: i32) -> i32 {
    %c0_i32 = arith.constant 0 : i32
    %c0_i32_0 = arith.constant 0 : i32
    return %c0_i32 : i32
  }
  func.func @transform_1(%arg0: i32) -> (i32, i32, i32) {
    %c0_i32 = arith.constant 0 : i32
    %c0_i32_0 = arith.constant 0 : i32
    %c0_i32_1 = arith.constant 0 : i32
    return %arg0, %c0_i32, %c0_i32_0 : i32, i32, i32
  }
  func.func @transform_2(%arg0: i32) -> (i32, i32) {
    %c0_i32 = arith.constant 0 : i32
    %c0_i32_0 = arith.constant 0 : i32
    %c0_i32_1 = arith.constant 0 : i32
    return %c0_i32, %c0_i32_0 : i32, i32
  }
  func.func @transform_3(%arg0: i32) -> (i32, i32) {
    %c0_i32 = arith.constant 0 : i32
    %c0_i32_0 = arith.constant 0 : i32
    %c0_i32_1 = arith.constant 0 : i32
    return %c0_i32, %c0_i32_0 : i32, i32
  }
  func.func @transform_4(%arg0: i32) -> (i32, i32) {
    %c0_i32 = arith.constant 0 : i32
    %c0_i32_0 = arith.constant 0 : i32
    %c0_i32_1 = arith.constant 0 : i32
    return %c0_i32, %c0_i32_0 : i32, i32
  }
  func.func @transform_5(%arg0: i32) -> (i32, i32) {
    %c0_i32 = arith.constant 0 : i32
    %c0_i32_0 = arith.constant 0 : i32
    %c0_i32_1 = arith.constant 0 : i32
    return %c0_i32, %c0_i32_0 : i32, i32
  }
  func.func @transform_6(%arg0: i32) -> (i32, i32) {
    %c0_i32 = arith.constant 0 : i32
    %c0_i32_0 = arith.constant 0 : i32
    %c0_i32_1 = arith.constant 0 : i32
    return %c0_i32, %c0_i32_0 : i32, i32
  }
  func.func @transform_7(%arg0: i32) -> (i32, i32) {
    %c0_i32 = arith.constant 0 : i32
    %c0_i32_0 = arith.constant 0 : i32
    %c0_i32_1 = arith.constant 0 : i32
    return %c0_i32, %c0_i32_0 : i32, i32
  }
  func.func @transform_8(%arg0: i32) -> (i32, i32) {
    %c0_i32 = arith.constant 0 : i32
    %c0_i32_0 = arith.constant 0 : i32
    %c0_i32_1 = arith.constant 0 : i32
    return %c0_i32, %c0_i32_0 : i32, i32
  }
  func.func @transform_9(%arg0: i32) -> (i32, i32) {
    %c0_i32 = arith.constant 0 : i32
    %c0_i32_0 = arith.constant 0 : i32
    %c0_i32_1 = arith.constant 0 : i32
    return %c0_i32, %c0_i32_0 : i32, i32
  }
  func.func @transform_10(%arg0: i32) -> (i32, i32) {
    %c0_i32 = arith.constant 0 : i32
    %c0_i32_0 = arith.constant 0 : i32
    %c0_i32_1 = arith.constant 0 : i32
    return %c0_i32, %c0_i32_0 : i32, i32
  }
  func.func @transform_11(%arg0: i32) -> (i32, i32) {
    %c0_i32 = arith.constant 0 : i32
    %c0_i32_0 = arith.constant 0 : i32
    %c0_i32_1 = arith.constant 0 : i32
    return %c0_i32, %c0_i32_0 : i32, i32
  }
  func.func @transform_12(%arg0: i32) -> (i32, i32) {
    %c0_i32 = arith.constant 0 : i32
    %c0_i32_0 = arith.constant 0 : i32
    %c0_i32_1 = arith.constant 0 : i32
    return %c0_i32, %c0_i32_0 : i32, i32
  }
  func.func @transform_13(%arg0: i32) -> (i32, i32) {
    %c0_i32 = arith.constant 0 : i32
    %c0_i32_0 = arith.constant 0 : i32
    %c0_i32_1 = arith.constant 0 : i32
    return %c0_i32, %c0_i32_0 : i32, i32
  }
  func.func @transform_14(%arg0: i32) -> (i32, i32) {
    %c0_i32 = arith.constant 0 : i32
    %c0_i32_0 = arith.constant 0 : i32
    %c0_i32_1 = arith.constant 0 : i32
    return %c0_i32, %c0_i32_0 : i32, i32
  }
  func.func @transform_15(%arg0: i32) -> (i32, i32) {
    %c0_i32 = arith.constant 0 : i32
    %c0_i32_0 = arith.constant 0 : i32
    %c0_i32_1 = arith.constant 0 : i32
    return %c0_i32, %c0_i32_0 : i32, i32
  }
  func.func @transform_16(%arg0: i32) -> (i32, i32) {
    %c0_i32 = arith.constant 0 : i32
    %c0_i32_0 = arith.constant 0 : i32
    %c0_i32_1 = arith.constant 0 : i32
    return %c0_i32, %c0_i32_0 : i32, i32
  }
  func.func @transform_17(%arg0: i32) -> (i32, i32, i32) {
    %c0_i32 = arith.constant 0 : i32
    %c0_i32_0 = arith.constant 0 : i32
    %c0_i32_1 = arith.constant 0 : i32
    return %arg0, %c0_i32, %c0_i32_0 : i32, i32, i32
  }
  func.func @transform_18(%arg0: i32) -> (i32, i32, i32) {
    %c0_i32 = arith.constant 0 : i32
    %c0_i32_0 = arith.constant 0 : i32
    %c0_i32_1 = arith.constant 0 : i32
    return %arg0, %c0_i32, %c0_i32_0 : i32, i32, i32
  }
  func.func @transform_19(%arg0: i32) -> (i32, i32) {
    %c0_i32 = arith.constant 0 : i32
    %c0_i32_0 = arith.constant 0 : i32
    %c0_i32_1 = arith.constant 0 : i32
    return %c0_i32, %c0_i32_0 : i32, i32
  }
}

</mosaic_0001>

<llo_original>
// kernel: _run_seq.1
$region0: #{_run_seq.1}
  #allocation0 [shape = 'u32[]', space=smem, size = 0x4, offset = 0x4, fixed_abs, tag = 'smem constant byte address 0x4 - core index']
  #allocation1 [shape = 'u32[144,128]{1,0:T(1,128)}', space=vmem, size = 0x12000, scoped, tag = 'internal scratch']
  #allocation2 [shape = 'f32[8,128]{1,0:T(8,128)}', space=vmem, size = 0x1000, scoped, tag = 'scratch operand']
  #allocation3 [shape = 'f32[8,4]{1,0:T(8,128)}', space=vmem, size = 0x1000, scoped, tag = 'scratch operand']
  %s0 = inlined_call_operand.vmem [shape: f32[8], index: 0, kind: input, shape index: {}]
  %s1 = inlined_call_operand.vmem [shape: f32[8,8,20], index: 1, kind: input, shape index: {}]
  %s2 = inlined_call_operand.vmem [shape: f32[8,4], index: 2, kind: input, shape index: {}]
  %s3 = inlined_call_operand.vmem [shape: f32[8,128], index: 3, kind: input, shape index: {}, may-alias: {3,19}]
  %s4 = inlined_call_operand.vmem [shape: bf16[16,100], index: 4, kind: input, shape index: {}]
  %s5 = inlined_call_operand.vmem [shape: f32[1,100], index: 5, kind: input, shape index: {}]
  %s6 = inlined_call_operand.hbm [shape: bf16[100,100], index: 6, kind: input, shape index: {}]
  %s7 = inlined_call_operand.vmem [shape: f32[1,100], index: 7, kind: input, shape index: {}]
  %s8 = inlined_call_operand.vmem [shape: bf16[100,16], index: 8, kind: input, shape index: {}]
  %s9 = inlined_call_operand.vmem [shape: f32[1,16], index: 9, kind: input, shape index: {}]
  %s10 = inlined_call_operand.vmem [shape: bf16[4,128], index: 10, kind: input, shape index: {}]
  %s11 = inlined_call_operand.vmem [shape: bf16[16,128], index: 11, kind: input, shape index: {}]
  %s12 = inlined_call_operand.vmem [shape: bf16[128,128], index: 12, kind: input, shape index: {}]
  %s13 = inlined_call_operand.vmem [shape: f32[1,128], index: 13, kind: input, shape index: {}]
  %s14 = inlined_call_operand.vmem [shape: f32[1,128], index: 14, kind: input, shape index: {}]
  %s15 = inlined_call_operand.vmem [shape: bf16[128,4], index: 15, kind: input, shape index: {}]
  %s16 = inlined_call_operand.vmem [shape: f32[1,4], index: 16, kind: input, shape index: {}]
  %s17 = inlined_call_operand.vmem [shape: f32[8,8,4], index: 17, kind: output, shape index: {0}]
  %s18 = inlined_call_operand.hbm [shape: f32[8,8,16], index: 18, kind: output, shape index: {1}]
  %s19 = inlined_call_operand.vmem [shape: f32[8,128], index: 19, kind: output, shape index: {2}, may-alias: {3,19}]
  %20 = xla_tuple %s17, %s18, %s19
  %s21 = sld [smem:[#allocation0]]
  $region133: #{_run_seq.1} parent=0
    _
  %s23 = ssub.s32 1, %s21
  %s24 = scalar_select 0, %s23, %s21
  $region1: #{_run_seq.1} parent=0
    #allocation4 [shape = 'u8[512]{0}', space=smem, size = 0x200, scoped, tag = 'input window, operand 0, single buffered']
    #allocation5 [shape = 's32[2]{0}', space=sflag, size = 0x8, scoped, tag = 'scoped memory for _run_seq.1']
    #allocation6 [shape = 's32[2]{0}', space=sflag, size = 0x8, scoped, tag = 'scoped memory for _run_seq.1']
    #allocation7 [shape = 's32[2]{0}', space=sflag, size = 0x8, scoped, tag = 'scoped memory for _run_seq.1']
    #allocation8 [shape = 'u8[26624]{0}', space=vmem, size = 0x6800, scoped, tag = 'input window, operand 6, single buffered']
    #allocation9 [shape = 'u8[8192]{0}', space=vmem, size = 0x2000, scoped, tag = 'output window, operand 1']
    %25 = vsyncpa [#allocation7], 0
    %26 = vsyncpa [#allocation5], 0
    %27 = vsyncpa [#allocation6], 0
    %s28 = scalar_lea.sflag [#allocation6], 1
    %29 = vsyncpa %s28, 0
    loop: start=0, step=1, limit=10
    $region2: #{_run_seq.1} parent=1 // loop_pre_header
      _
    $region3: #{_run_seq.1} parent=1 // loop_header
      %s31 = sphi 0, %s35
      %p32 = scmp.ge.s32.totalorder %s31, 10
      %s39 = sphi 0, %s39
      %s41 = sphi 0, %s39
      %s42 = sphi 0, %s41
      %s56 = sphi 0, %s42
      %s62 = sphi 0, %s64
      %s65 = sphi 0, %s62
      %s66 = sphi 0, %s65
      %s82 = sphi 0, %s66
      %s86 = sphi 0, %s86
      %s88 = sphi 0, %s86
      %s89 = sphi 0, %s88
      %s103 = sphi 0, %s89
      %s107 = sphi 0, %s107
      %s109 = sphi 0, %s107
      %s110 = sphi 0, %s109
      %s124 = sphi 0, %s110
      %s128 = sphi 0, %s128
      %s130 = sphi 0, %s128
      %s131 = sphi 0, %s130
      %s145 = sphi 0, %s131
      %s149 = sphi 0, %s149
      %s151 = sphi 0, %s149
      %s152 = sphi 0, %s151
      %s166 = sphi 0, %s152
      %s170 = sphi 0, %s170
      %s172 = sphi 0, %s170
      %s173 = sphi 0, %s172
      %s187 = sphi 0, %s173
      %s191 = sphi 0, %s191
      %s193 = sphi 0, %s191
      %s194 = sphi 0, %s193
      %s208 = sphi 0, %s194
      %s212 = sphi 0, %s212
      %s214 = sphi 0, %s212
      %s215 = sphi 0, %s214
      %s229 = sphi 0, %s215
      %s233 = sphi 0, %s233
      %s235 = sphi 0, %s233
      %s236 = sphi 0, %s235
      %s250 = sphi 0, %s236
      %s254 = sphi 0, %s254
      %s256 = sphi 0, %s254
      %s257 = sphi 0, %s256
      %s271 = sphi 0, %s257
      %s275 = sphi 0, %s275
      %s277 = sphi 0, %s275
      %s278 = sphi 0, %s277
      %s292 = sphi 0, %s278
      %s296 = sphi 0, %s296
      %s298 = sphi 0, %s296
      %s299 = sphi 0, %s298
      %s313 = sphi 0, %s299
      %s317 = sphi 0, %s317
      %s319 = sphi 0, %s317
      %s320 = sphi 0, %s319
      %s334 = sphi 0, %s320
      %s338 = sphi 0, %s338
      %s340 = sphi 0, %s338
      %s341 = sphi 0, %s340
      %s355 = sphi 0, %s341
      %s359 = sphi 0, %s359
      %s361 = sphi 0, %s359
      %s362 = sphi 0, %s361
      %s376 = sphi 0, %s362
      %s380 = sphi 0, %s380
      %s382 = sphi 0, %s380
      %s383 = sphi 0, %s382
      %s397 = sphi 0, %s383
      %s403 = sphi 0, %s405
      %s406 = sphi 0, %s403
      %s407 = sphi 0, %s406
      %s423 = sphi 0, %s407
      %s429 = sphi 0, %s431
      %s432 = sphi 0, %s429
      %s433 = sphi 0, %s432
      %s449 = sphi 0, %s433
      %s453 = sphi 0, %s453
      %s455 = sphi 0, %s453
      %s456 = sphi 0, %s455
      %s470 = sphi 0, %s456
    $region4: #{_run_seq.1} parent=1 // loop_header_branch
      %34 = sbr.rel (%p32) target = $region8
    $region5: #{_run_seq.1} parent=1 // loop_body
      %s36 = ssub.s32 %s31, 1
      %s37 = ssub.s32 %s31, 2
      %s38 = sadd.s32 %s31, 1
      %s40 = sadd.s32 %s39, 1
      %p43 = scmp.eq.s32.totalorder %s31, 7
      %p44 = scmp.ne.s32.totalorder %s39, %s41
      %p45 = scmp.eq.s32.totalorder %s31, 0
      %p46 = por %p44, %p45
      %p47 = scmp.ne.s32.totalorder %s39, %s41
      %p48 = scmp.eq.s32.totalorder %s36, 7
      %p49 = por %p47, %p48
      %p50 = scmp.ne.s32.totalorder %s41, %s42
      %p51 = scmp.eq.s32.totalorder %s36, 0
      %p52 = por %p50, %p51
      %p53 = scmp.ne.s32.totalorder %s41, %s42
      %p54 = scmp.eq.s32.totalorder %s37, 7
      %p55 = por %p53, %p54
      %p57 = scmp.ne.s32.totalorder %s42, %s56
      %p58 = scmp.eq.s32.totalorder %s37, 0
      %p59 = por %p57, %p58
      %s60 = ssub.s32 %s31, %s38
      %p61 = scmp.eq.s32.totalorder %s60, 0
      %s63 = sadd.s32 %s62, 1
      %s64 = scalar_select %p61, %s62, %s63
      %p67 = pneg %p61
      %p68 = scmp.eq.s32.totalorder %s31, 7
      %p69 = por %p67, %p68
      %p70 = scmp.ne.s32.totalorder %s62, %s65
      %p71 = scmp.eq.s32.totalorder %s31, 0
      %p72 = por %p70, %p71
      %p73 = scmp.ne.s32.totalorder %s62, %s65
      %p74 = scmp.eq.s32.totalorder %s36, 7
      %p75 = por %p73, %p74
      %p76 = scmp.ne.s32.totalorder %s65, %s66
      %p77 = scmp.eq.s32.totalorder %s36, 0
      %p78 = por %p76, %p77
      %p79 = scmp.ne.s32.totalorder %s65, %s66
      %p80 = scmp.eq.s32.totalorder %s37, 7
      %p81 = por %p79, %p80
      %p83 = scmp.ne.s32.totalorder %s66, %s82
      %p84 = scmp.eq.s32.totalorder %s37, 0
      %p85 = por %p83, %p84
      %s87 = sadd.s32 %s86, 1
      %p90 = scmp.eq.s32.totalorder %s31, 7
      %p91 = scmp.ne.s32.totalorder %s86, %s88
      %p92 = scmp.eq.s32.totalorder %s31, 0
      %p93 = por %p91, %p92
      %p94 = scmp.ne.s32.totalorder %s86, %s88
      %p95 = scmp.eq.s32.totalorder %s36, 7
      %p96 = por %p94, %p95
      %p97 = scmp.ne.s32.totalorder %s88, %s89
      %p98 = scmp.eq.s32.totalorder %s36, 0
      %p99 = por %p97, %p98
      %p100 = scmp.ne.s32.totalorder %s88, %s89
      %p101 = scmp.eq.s32.totalorder %s37, 7
      %p102 = por %p100, %p101
      %p104 = scmp.ne.s32.totalorder %s89, %s103
      %p105 = scmp.eq.s32.totalorder %s37, 0
      %p106 = por %p104, %p105
      %s108 = sadd.s32 %s107, 1
      %p111 = scmp.eq.s32.totalorder %s31, 7
      %p112 = scmp.ne.s32.totalorder %s107, %s109
      %p113 = scmp.eq.s32.totalorder %s31, 0
      %p114 = por %p112, %p113
      %p115 = scmp.ne.s32.totalorder %s107, %s109
      %p116 = scmp.eq.s32.totalorder %s36, 7
      %p117 = por %p115, %p116
      %p118 = scmp.ne.s32.totalorder %s109, %s110
      %p119 = scmp.eq.s32.totalorder %s36, 0
      %p120 = por %p118, %p119
      %p121 = scmp.ne.s32.totalorder %s109, %s110
      %p122 = scmp.eq.s32.totalorder %s37, 7
      %p123 = por %p121, %p122
      %p125 = scmp.ne.s32.totalorder %s110, %s124
      %p126 = scmp.eq.s32.totalorder %s37, 0
      %p127 = por %p125, %p126
      %s129 = sadd.s32 %s128, 1
      %p132 = scmp.eq.s32.totalorder %s31, 7
      %p133 = scmp.ne.s32.totalorder %s128, %s130
      %p134 = scmp.eq.s32.totalorder %s31, 0
      %p135 = por %p133, %p134
      %p136 = scmp.ne.s32.totalorder %s128, %s130
      %p137 = scmp.eq.s32.totalorder %s36, 7
      %p138 = por %p136, %p137
      %p139 = scmp.ne.s32.totalorder %s130, %s131
      %p140 = scmp.eq.s32.totalorder %s36, 0
      %p141 = por %p139, %p140
      %p142 = scmp.ne.s32.totalorder %s130, %s131
      %p143 = scmp.eq.s32.totalorder %s37, 7
      %p144 = por %p142, %p143
      %p146 = scmp.ne.s32.totalorder %s131, %s145
      %p147 = scmp.eq.s32.totalorder %s37, 0
      %p148 = por %p146, %p147
      %s150 = sadd.s32 %s149, 1
      %p153 = scmp.eq.s32.totalorder %s31, 7
      %p154 = scmp.ne.s32.totalorder %s149, %s151
      %p155 = scmp.eq.s32.totalorder %s31, 0
      %p156 = por %p154, %p155
      %p157 = scmp.ne.s32.totalorder %s149, %s151
      %p158 = scmp.eq.s32.totalorder %s36, 7
      %p159 = por %p157, %p158
      %p160 = scmp.ne.s32.totalorder %s151, %s152
      %p161 = scmp.eq.s32.totalorder %s36, 0
      %p162 = por %p160, %p161
      %p163 = scmp.ne.s32.totalorder %s151, %s152
      %p164 = scmp.eq.s32.totalorder %s37, 7
      %p165 = por %p163, %p164
      %p167 = scmp.ne.s32.totalorder %s152, %s166
      %p168 = scmp.eq.s32.totalorder %s37, 0
      %p169 = por %p167, %p168
      %s171 = sadd.s32 %s170, 1
      %p174 = scmp.eq.s32.totalorder %s31, 7
      %p175 = scmp.ne.s32.totalorder %s170, %s172
      %p176 = scmp.eq.s32.totalorder %s31, 0
      %p177 = por %p175, %p176
      %p178 = scmp.ne.s32.totalorder %s170, %s172
      %p179 = scmp.eq.s32.totalorder %s36, 7
      %p180 = por %p178, %p179
      %p181 = scmp.ne.s32.totalorder %s172, %s173
      %p182 = scmp.eq.s32.totalorder %s36, 0
      %p183 = por %p181, %p182
      %p184 = scmp.ne.s32.totalorder %s172, %s173
      %p185 = scmp.eq.s32.totalorder %s37, 7
      %p186 = por %p184, %p185
      %p188 = scmp.ne.s32.totalorder %s173, %s187
      %p189 = scmp.eq.s32.totalorder %s37, 0
      %p190 = por %p188, %p189
      %s192 = sadd.s32 %s191, 1
      %p195 = scmp.eq.s32.totalorder %s31, 7
      %p196 = scmp.ne.s32.totalorder %s191, %s193
      %p197 = scmp.eq.s32.totalorder %s31, 0
      %p198 = por %p196, %p197
      %p199 = scmp.ne.s32.totalorder %s191, %s193
      %p200 = scmp.eq.s32.totalorder %s36, 7
      %p201 = por %p199, %p200
      %p202 = scmp.ne.s32.totalorder %s193, %s194
      %p203 = scmp.eq.s32.totalorder %s36, 0
      %p204 = por %p202, %p203
      %p205 = scmp.ne.s32.totalorder %s193, %s194
      %p206 = scmp.eq.s32.totalorder %s37, 7
      %p207 = por %p205, %p206
      %p209 = scmp.ne.s32.totalorder %s194, %s208
      %p210 = scmp.eq.s32.totalorder %s37, 0
      %p211 = por %p209, %p210
      %s213 = sadd.s32 %s212, 1
      %p216 = scmp.eq.s32.totalorder %s31, 7
      %p217 = scmp.ne.s32.totalorder %s212, %s214
      %p218 = scmp.eq.s32.totalorder %s31, 0
      %p219 = por %p217, %p218
      %p220 = scmp.ne.s32.totalorder %s212, %s214
      %p221 = scmp.eq.s32.totalorder %s36, 7
      %p222 = por %p220, %p221
      %p223 = scmp.ne.s32.totalorder %s214, %s215
      %p224 = scmp.eq.s32.totalorder %s36, 0
      %p225 = por %p223, %p224
      %p226 = scmp.ne.s32.totalorder %s214, %s215
      %p227 = scmp.eq.s32.totalorder %s37, 7
      %p228 = por %p226, %p227
      %p230 = scmp.ne.s32.totalorder %s215, %s229
      %p231 = scmp.eq.s32.totalorder %s37, 0
      %p232 = por %p230, %p231
      %s234 = sadd.s32 %s233, 1
      %p237 = scmp.eq.s32.totalorder %s31, 7
      %p238 = scmp.ne.s32.totalorder %s233, %s235
      %p239 = scmp.eq.s32.totalorder %s31, 0
      %p240 = por %p238, %p239
      %p241 = scmp.ne.s32.totalorder %s233, %s235
      %p242 = scmp.eq.s32.totalorder %s36, 7
      %p243 = por %p241, %p242
      %p244 = scmp.ne.s32.totalorder %s235, %s236
      %p245 = scmp.eq.s32.totalorder %s36, 0
      %p246 = por %p244, %p245
      %p247 = scmp.ne.s32.totalorder %s235, %s236
      %p248 = scmp.eq.s32.totalorder %s37, 7
      %p249 = por %p247, %p248
      %p251 = scmp.ne.s32.totalorder %s236, %s250
      %p252 = scmp.eq.s32.totalorder %s37, 0
      %p253 = por %p251, %p252
      %s255 = sadd.s32 %s254, 1
      %p258 = scmp.eq.s32.totalorder %s31, 7
      %p259 = scmp.ne.s32.totalorder %s254, %s256
      %p260 = scmp.eq.s32.totalorder %s31, 0
      %p261 = por %p259, %p260
      %p262 = scmp.ne.s32.totalorder %s254, %s256
      %p263 = scmp.eq.s32.totalorder %s36, 7
      %p264 = por %p262, %p263
      %p265 = scmp.ne.s32.totalorder %s256, %s257
      %p266 = scmp.eq.s32.totalorder %s36, 0
      %p267 = por %p265, %p266
      %p268 = scmp.ne.s32.totalorder %s256, %s257
      %p269 = scmp.eq.s32.totalorder %s37, 7
      %p270 = por %p268, %p269
      %p272 = scmp.ne.s32.totalorder %s257, %s271
      %p273 = scmp.eq.s32.totalorder %s37, 0
      %p274 = por %p272, %p273
      %s276 = sadd.s32 %s275, 1
      %p279 = scmp.eq.s32.totalorder %s31, 7
      %p280 = scmp.ne.s32.totalorder %s275, %s277
      %p281 = scmp.eq.s32.totalorder %s31, 0
      %p282 = por %p280, %p281
      %p283 = scmp.ne.s32.totalorder %s275, %s277
      %p284 = scmp.eq.s32.totalorder %s36, 7
      %p285 = por %p283, %p284
      %p286 = scmp.ne.s32.totalorder %s277, %s278
      %p287 = scmp.eq.s32.totalorder %s36, 0
      %p288 = por %p286, %p287
      %p289 = scmp.ne.s32.totalorder %s277, %s278
      %p290 = scmp.eq.s32.totalorder %s37, 7
      %p291 = por %p289, %p290
      %p293 = scmp.ne.s32.totalorder %s278, %s292
      %p294 = scmp.eq.s32.totalorder %s37, 0
      %p295 = por %p293, %p294
      %s297 = sadd.s32 %s296, 1
      %p300 = scmp.eq.s32.totalorder %s31, 7
      %p301 = scmp.ne.s32.totalorder %s296, %s298
      %p302 = scmp.eq.s32.totalorder %s31, 0
      %p303 = por %p301, %p302
      %p304 = scmp.ne.s32.totalorder %s296, %s298
      %p305 = scmp.eq.s32.totalorder %s36, 7
      %p306 = por %p304, %p305
      %p307 = scmp.ne.s32.totalorder %s298, %s299
      %p308 = scmp.eq.s32.totalorder %s36, 0
      %p309 = por %p307, %p308
      %p310 = scmp.ne.s32.totalorder %s298, %s299
      %p311 = scmp.eq.s32.totalorder %s37, 7
      %p312 = por %p310, %p311
      %p314 = scmp.ne.s32.totalorder %s299, %s313
      %p315 = scmp.eq.s32.totalorder %s37, 0
      %p316 = por %p314, %p315
      %s318 = sadd.s32 %s317, 1
      %p321 = scmp.eq.s32.totalorder %s31, 7
      %p322 = scmp.ne.s32.totalorder %s317, %s319
      %p323 = scmp.eq.s32.totalorder %s31, 0
      %p324 = por %p322, %p323
      %p325 = scmp.ne.s32.totalorder %s317, %s319
      %p326 = scmp.eq.s32.totalorder %s36, 7
      %p327 = por %p325, %p326
      %p328 = scmp.ne.s32.totalorder %s319, %s320
      %p329 = scmp.eq.s32.totalorder %s36, 0
      %p330 = por %p328, %p329
      %p331 = scmp.ne.s32.totalorder %s319, %s320
      %p332 = scmp.eq.s32.totalorder %s37, 7
      %p333 = por %p331, %p332
      %p335 = scmp.ne.s32.totalorder %s320, %s334
      %p336 = scmp.eq.s32.totalorder %s37, 0
      %p337 = por %p335, %p336
      %s339 = sadd.s32 %s338, 1
      %p342 = scmp.eq.s32.totalorder %s31, 7
      %p343 = scmp.ne.s32.totalorder %s338, %s340
      %p344 = scmp.eq.s32.totalorder %s31, 0
      %p345 = por %p343, %p344
      %p346 = scmp.ne.s32.totalorder %s338, %s340
      %p347 = scmp.eq.s32.totalorder %s36, 7
      %p348 = por %p346, %p347
      %p349 = scmp.ne.s32.totalorder %s340, %s341
      %p350 = scmp.eq.s32.totalorder %s36, 0
      %p351 = por %p349, %p350
      %p352 = scmp.ne.s32.totalorder %s340, %s341
      %p353 = scmp.eq.s32.totalorder %s37, 7
      %p354 = por %p352, %p353
      %p356 = scmp.ne.s32.totalorder %s341, %s355
      %p357 = scmp.eq.s32.totalorder %s37, 0
      %p358 = por %p356, %p357
      %s360 = sadd.s32 %s359, 1
      %p363 = scmp.eq.s32.totalorder %s31, 7
      %p364 = scmp.ne.s32.totalorder %s359, %s361
      %p365 = scmp.eq.s32.totalorder %s31, 0
      %p366 = por %p364, %p365
      %p367 = scmp.ne.s32.totalorder %s359, %s361
      %p368 = scmp.eq.s32.totalorder %s36, 7
      %p369 = por %p367, %p368
      %p370 = scmp.ne.s32.totalorder %s361, %s362
      %p371 = scmp.eq.s32.totalorder %s36, 0
      %p372 = por %p370, %p371
      %p373 = scmp.ne.s32.totalorder %s361, %s362
      %p374 = scmp.eq.s32.totalorder %s37, 7
      %p375 = por %p373, %p374
      %p377 = scmp.ne.s32.totalorder %s362, %s376
      %p378 = scmp.eq.s32.totalorder %s37, 0
      %p379 = por %p377, %p378
      %s381 = sadd.s32 %s380, 1
      %p384 = scmp.eq.s32.totalorder %s31, 7
      %p385 = scmp.ne.s32.totalorder %s380, %s382
      %p386 = scmp.eq.s32.totalorder %s31, 0
      %p387 = por %p385, %p386
      %p388 = scmp.ne.s32.totalorder %s380, %s382
      %p389 = scmp.eq.s32.totalorder %s36, 7
      %p390 = por %p388, %p389
      %p391 = scmp.ne.s32.totalorder %s382, %s383
      %p392 = scmp.eq.s32.totalorder %s36, 0
      %p393 = por %p391, %p392
      %p394 = scmp.ne.s32.totalorder %s382, %s383
      %p395 = scmp.eq.s32.totalorder %s37, 7
      %p396 = por %p394, %p395
      %p398 = scmp.ne.s32.totalorder %s383, %s397
      %p399 = scmp.eq.s32.totalorder %s37, 0
      %p400 = por %p398, %p399
      %s401 = ssub.s32 %s31, %s38
      %p402 = scmp.eq.s32.totalorder %s401, 0
      %s404 = sadd.s32 %s403, 1
      %s405 = scalar_select %p402, %s403, %s404
      %p408 = pneg %p402
      %p409 = scmp.eq.s32.totalorder %s31, 7
      %p410 = por %p408, %p409
      %p411 = scmp.ne.s32.totalorder %s403, %s406
      %p412 = scmp.eq.s32.totalorder %s31, 0
      %p413 = por %p411, %p412
      %p414 = scmp.ne.s32.totalorder %s403, %s406
      %p415 = scmp.eq.s32.totalorder %s36, 7
      %p416 = por %p414, %p415
      %p417 = scmp.ne.s32.totalorder %s406, %s407
      %p418 = scmp.eq.s32.totalorder %s36, 0
      %p419 = por %p417, %p418
      %p420 = scmp.ne.s32.totalorder %s406, %s407
      %p421 = scmp.eq.s32.totalorder %s37, 7
      %p422 = por %p420, %p421
      %p424 = scmp.ne.s32.totalorder %s407, %s423
      %p425 = scmp.eq.s32.totalorder %s37, 0
      %p426 = por %p424, %p425
      %s427 = ssub.s32 %s31, %s38
      %p428 = scmp.eq.s32.totalorder %s427, 0
      %s430 = sadd.s32 %s429, 1
      %s431 = scalar_select %p428, %s429, %s430
      %p434 = pneg %p428
      %p435 = scmp.eq.s32.totalorder %s31, 7
      %p436 = por %p434, %p435
      %p437 = scmp.ne.s32.totalorder %s429, %s432
      %p438 = scmp.eq.s32.totalorder %s31, 0
      %p439 = por %p437, %p438
      %p440 = scmp.ne.s32.totalorder %s429, %s432
      %p441 = scmp.eq.s32.totalorder %s36, 7
      %p442 = por %p440, %p441
      %p443 = scmp.ne.s32.totalorder %s432, %s433
      %p444 = scmp.eq.s32.totalorder %s36, 0
      %p445 = por %p443, %p444
      %p446 = scmp.ne.s32.totalorder %s432, %s433
      %p447 = scmp.eq.s32.totalorder %s37, 7
      %p448 = por %p446, %p447
      %p450 = scmp.ne.s32.totalorder %s433, %s449
      %p451 = scmp.eq.s32.totalorder %s37, 0
      %p452 = por %p450, %p451
      %s454 = sadd.s32 %s453, 1
      %p457 = scmp.eq.s32.totalorder %s31, 7
      %p458 = scmp.ne.s32.totalorder %s453, %s455
      %p459 = scmp.eq.s32.totalorder %s31, 0
      %p460 = por %p458, %p459
      %p461 = scmp.ne.s32.totalorder %s453, %s455
      %p462 = scmp.eq.s32.totalorder %s36, 7
      %p463 = por %p461, %p462
      %p464 = scmp.ne.s32.totalorder %s455, %s456
      %p465 = scmp.eq.s32.totalorder %s36, 0
      %p466 = por %p464, %p465
      %p467 = scmp.ne.s32.totalorder %s455, %s456
      %p468 = scmp.eq.s32.totalorder %s37, 7
      %p469 = por %p467, %p468
      %p471 = scmp.ne.s32.totalorder %s456, %s470
      %p472 = scmp.eq.s32.totalorder %s37, 0
      %p473 = por %p471, %p472
      %p474 = scmp.le.s32.totalorder 1, %s31
      %p475 = scmp.lt.s32.totalorder %s31, 9
      %p476 = pnand %p474, %p475
      %p477 = pneg %p476
      // Predicated region
      $region9: #{_run_seq.1} parent=5 // pred_check
        _
      $region10: #{_run_seq.1} parent=5 // pred_check_branch
        %479 = sbr.rel (%p476) target = $region12
      $region11: #{_run_seq.1} parent=5 // pred_region
        %s480 = ssub.s32 %s31, 1
        // Predicated region
        $region13: #{_run_seq.1} parent=11 // pred_check
          %p481 = pneg %p52
        $region14: #{_run_seq.1} parent=11 // pred_check_branch
          %483 = sbr.rel (%p481) target = $region16
        $region15: #{_run_seq.1} parent=11 // pred_region
          %s485 = ssub.s32 16, 16
          %486 = vsyncadd [#allocation7], %s485
          %s488 = sshll.u32 %s0, 4
          %s489 = int_to_ptr.vmem [resolvable:$true] %s488
          %491 = dma.vmem_to_smem %s489, 16, [#allocation4], [#allocation7]
        $region16: #{_run_seq.1} parent=11 // pred_fallthru
          _
        // Predicated region
        $region17: #{_run_seq.1} parent=11 // pred_check
          %p492 = pneg %p99
        $region18: #{_run_seq.1} parent=11 // pred_check_branch
          %494 = sbr.rel (%p492) target = $region20
        $region19: #{_run_seq.1} parent=11 // pred_region
          _
        $region20: #{_run_seq.1} parent=11 // pred_fallthru
          _
        // Predicated region
        $region21: #{_run_seq.1} parent=11 // pred_check
          %p495 = pneg %p120
        $region22: #{_run_seq.1} parent=11 // pred_check_branch
          %497 = sbr.rel (%p495) target = $region24
        $region23: #{_run_seq.1} parent=11 // pred_region
          _
        $region24: #{_run_seq.1} parent=11 // pred_fallthru
          _
        // Predicated region
        $region25: #{_run_seq.1} parent=11 // pred_check
          %p498 = pneg %p141
        $region26: #{_run_seq.1} parent=11 // pred_check_branch
          %500 = sbr.rel (%p498) target = $region28
        $region27: #{_run_seq.1} parent=11 // pred_region
          _
        $region28: #{_run_seq.1} parent=11 // pred_fallthru
          _
        // Predicated region
        $region29: #{_run_seq.1} parent=11 // pred_check
          %p501 = pneg %p162
        $region30: #{_run_seq.1} parent=11 // pred_check_branch
          %503 = sbr.rel (%p501) target = $region32
        $region31: #{_run_seq.1} parent=11 // pred_region
          _
        $region32: #{_run_seq.1} parent=11 // pred_fallthru
          _
        // Predicated region
        $region33: #{_run_seq.1} parent=11 // pred_check
          %p504 = pneg %p183
        $region34: #{_run_seq.1} parent=11 // pred_check_branch
          %506 = sbr.rel (%p504) target = $region36
        $region35: #{_run_seq.1} parent=11 // pred_region
          %s508 = ssub.s32 832, 832
          %509 = vsyncadd [#allocation5], %s508
          %s510 = sshll.u32 [#allocation8], 4
          %s511 = int_to_ptr.vmem [resolvable:$true] %s510
          %516 = dma.hbm_to_vmem [thread:$0]  %s6, 832, %s511, [#allocation5], 64, 64, 4
        $region36: #{_run_seq.1} parent=11 // pred_fallthru
          _
        // Predicated region
        $region37: #{_run_seq.1} parent=11 // pred_check
          %p517 = pneg %p204
        $region38: #{_run_seq.1} parent=11 // pred_check_branch
          %519 = sbr.rel (%p517) target = $region40
        $region39: #{_run_seq.1} parent=11 // pred_region
          _
        $region40: #{_run_seq.1} parent=11 // pred_fallthru
          _
        // Predicated region
        $region41: #{_run_seq.1} parent=11 // pred_check
          %p520 = pneg %p225
        $region42: #{_run_seq.1} parent=11 // pred_check_branch
          %522 = sbr.rel (%p520) target = $region44
        $region43: #{_run_seq.1} parent=11 // pred_region
          _
        $region44: #{_run_seq.1} parent=11 // pred_fallthru
          _
        // Predicated region
        $region45: #{_run_seq.1} parent=11 // pred_check
          %p523 = pneg %p246
        $region46: #{_run_seq.1} parent=11 // pred_check_branch
          %525 = sbr.rel (%p523) target = $region48
        $region47: #{_run_seq.1} parent=11 // pred_region
          _
        $region48: #{_run_seq.1} parent=11 // pred_fallthru
          _
        // Predicated region
        $region49: #{_run_seq.1} parent=11 // pred_check
          %p526 = pneg %p267
        $region50: #{_run_seq.1} parent=11 // pred_check_branch
          %528 = sbr.rel (%p526) target = $region52
        $region51: #{_run_seq.1} parent=11 // pred_region
          _
        $region52: #{_run_seq.1} parent=11 // pred_fallthru
          _
        // Predicated region
        $region53: #{_run_seq.1} parent=11 // pred_check
          %p529 = pneg %p288
        $region54: #{_run_seq.1} parent=11 // pred_check_branch
          %531 = sbr.rel (%p529) target = $region56
        $region55: #{_run_seq.1} parent=11 // pred_region
          _
        $region56: #{_run_seq.1} parent=11 // pred_fallthru
          _
        // Predicated region
        $region57: #{_run_seq.1} parent=11 // pred_check
          %p532 = pneg %p309
        $region58: #{_run_seq.1} parent=11 // pred_check_branch
          %534 = sbr.rel (%p532) target = $region60
        $region59: #{_run_seq.1} parent=11 // pred_region
          _
        $region60: #{_run_seq.1} parent=11 // pred_fallthru
          _
        // Predicated region
        $region61: #{_run_seq.1} parent=11 // pred_check
          %p535 = pneg %p330
        $region62: #{_run_seq.1} parent=11 // pred_check_branch
          %537 = sbr.rel (%p535) target = $region64
        $region63: #{_run_seq.1} parent=11 // pred_region
          _
        $region64: #{_run_seq.1} parent=11 // pred_fallthru
          _
        // Predicated region
        $region65: #{_run_seq.1} parent=11 // pred_check
          %p538 = pneg %p351
        $region66: #{_run_seq.1} parent=11 // pred_check_branch
          %540 = sbr.rel (%p538) target = $region68
        $region67: #{_run_seq.1} parent=11 // pred_region
          _
        $region68: #{_run_seq.1} parent=11 // pred_fallthru
          _
        // Predicated region
        $region69: #{_run_seq.1} parent=11 // pred_check
          %p541 = pneg %p372
        $region70: #{_run_seq.1} parent=11 // pred_check_branch
          %543 = sbr.rel (%p541) target = $region72
        $region71: #{_run_seq.1} parent=11 // pred_region
          _
        $region72: #{_run_seq.1} parent=11 // pred_fallthru
          _
        // Predicated region
        $region73: #{_run_seq.1} parent=11 // pred_check
          %p544 = pneg %p393
        $region74: #{_run_seq.1} parent=11 // pred_check_branch
          %546 = sbr.rel (%p544) target = $region76
        $region75: #{_run_seq.1} parent=11 // pred_region
          _
        $region76: #{_run_seq.1} parent=11 // pred_fallthru
          _
      $region12: #{_run_seq.1} parent=5 // pred_fallthru
        _
      %p547 = scmp.lt.s32.totalorder %s31, 8
      // Predicated region
      $region77: #{_run_seq.1} parent=5 // pred_check
        %p548 = pneg %p547
      $region78: #{_run_seq.1} parent=5 // pred_check_branch
        %550 = sbr.rel (%p548) target = $region80
      $region79: #{_run_seq.1} parent=5 // pred_region
        // Predicated region
        $region81: #{_run_seq.1} parent=79 // pred_check
          %p551 = pneg %p72
        $region82: #{_run_seq.1} parent=79 // pred_check_branch
          %553 = sbr.rel (%p551) target = $region84
        $region83: #{_run_seq.1} parent=79 // pred_region
          %p554 = scmp.lt.s32.totalorder %s31, 7
          %s555 = scalar_select %p554, %s31, 7
          %s556 = smul.addr %s555, 8
          %s557 = scalar_lea.vmem %s1, %s556
        $region84: #{_run_seq.1} parent=79 // pred_fallthru
          _
      $region80: #{_run_seq.1} parent=5 // pred_fallthru
        _
      %p558 = scmp.le.s32.totalorder 1, %s31
      %p559 = scmp.lt.s32.totalorder %s31, 9
      %p560 = pnand %p558, %p559
      %p561 = pneg %p560
      // Predicated region
      $region85: #{_run_seq.1} parent=5 // pred_check
        _
      $region86: #{_run_seq.1} parent=5 // pred_check_branch
        %563 = sbr.rel (%p560) target = $region88
      $region87: #{_run_seq.1} parent=5 // pred_region
        %s564 = ssub.s32 %s31, 1
        // Predicated region
        $region89: #{_run_seq.1} parent=87 // pred_check
          %p565 = pneg %p52
        $region90: #{_run_seq.1} parent=87 // pred_check_branch
          %567 = sbr.rel (%p565) target = $region92
        $region91: #{_run_seq.1} parent=87 // pred_region
          %568 = dma.done [#allocation7], 16
        $region92: #{_run_seq.1} parent=87 // pred_fallthru
          _
        // Predicated region
        $region93: #{_run_seq.1} parent=87 // pred_check
          %p569 = pneg %p183
        $region94: #{_run_seq.1} parent=87 // pred_check_branch
          %571 = sbr.rel (%p569) target = $region96
        $region95: #{_run_seq.1} parent=87 // pred_region
          %572 = dma.done [#allocation5], 832
        $region96: #{_run_seq.1} parent=87 // pred_fallthru
          _
        %573 = sfence
        %p574 = pneg %p52
        %p575 = pneg %p49
        %p576 = scmp.lt.s32.totalorder %s36, 7
        %s577 = scalar_select %p576, %s36, 7
        %s578 = smul.addr %s577, 8
        %s579 = scalar_lea.vmem %s1, %s578
        %p580 = pneg %p78
        %p581 = pneg %p75
        %p582 = pneg %p99
        %p583 = pneg %p96
        %p584 = pneg %p120
        %p585 = pneg %p117
        %p586 = pneg %p141
        %p587 = pneg %p138
        %p588 = pneg %p162
        %p589 = pneg %p159
        %p590 = pneg %p183
        %p591 = pneg %p180
        %p592 = pneg %p204
        %p593 = pneg %p201
        %p594 = pneg %p225
        %p595 = pneg %p222
        %p596 = pneg %p246
        %p597 = pneg %p243
        %p598 = pneg %p267
        %p599 = pneg %p264
        %p600 = pneg %p288
        %p601 = pneg %p285
        %p602 = pneg %p309
        %p603 = pneg %p306
        %p604 = pneg %p330
        %p605 = pneg %p327
        %p606 = pneg %p351
        %p607 = pneg %p348
        %p608 = pneg %p372
        %p609 = pneg %p369
        %p610 = pneg %p393
        %p611 = pneg %p390
        %p612 = pneg %p419
        %p613 = pneg %p416
        %p614 = scmp.lt.s32.totalorder %s36, 7
        %s615 = scalar_select %p614, %s36, 7
        %s616 = smul.addr %s615, 8
        %s617 = scalar_lea.vmem %s17, %s616
        %p618 = pneg %p445
        %p619 = pneg %p442
        %s620 = sand.u32 %s432, 1
        %s621 = scalar_lea.sflag [#allocation6], %s620
        %s622 = sand.u32 %s432, 1
        %s623 = smul.addr %s622, 8
        %s624 = scalar_lea.vmem [#allocation9], %s623
        %p625 = pneg %p466
        %p626 = pneg %p463
        %p627 = scmp.lt.s32.totalorder %s36, 7
        %s628 = scalar_select %p627, %s36, 7
        %s629 = smul.addr %s628, 8
        %s630 = scalar_lea.vmem %s1, %s629
        %p631 = scmp.lt.s32.totalorder %s36, 7
        %s632 = scalar_select %p631, %s36, 7
        %s633 = smul.addr %s632, 8
        %s634 = scalar_lea.vmem %s17, %s633
        %p636 = scmp.eq.s32.totalorder %s36, 0
        // Predicated region
        $region97: #{_run_seq.1} parent=87 // pred_check
          %p637 = pneg %p636
        $region98: #{_run_seq.1} parent=87 // pred_check_branch
          %639 = sbr.rel (%p637) target = $region100
        $region99: #{_run_seq.1} parent=87 // pred_region
          %v640 = vld [vmem:[%s3] sm:$0xff]
          %641 = vst [vmem:[#allocation2] sm:$0xff] %v640
          %v642 = vld [vmem:[%s2] sm:$0xff]
          %vm643 = vcmask 31744
          %644 = vst.msk [vmem:[#allocation3] sm:$0xff] %vm643, %v642
        $region100: #{_run_seq.1} parent=87 // pred_fallthru
          _
        %v645 = vld [vmem:[%s630] sm:$0xff]
        %s646 = sld [smem:[#allocation4 + %s36]]
        %v647 = vstv %s646
        %v648 = vmul.f32 %v647, %v645
        %s649 = ssub.f32 1.0, %s646
        %v650 = vld [vmem:[#allocation3] sm:$0xff]
        %v651 = vstv %s649
        %v652 = vmul.f32 %v651, %v650
        %v653 = vadd.f32 %v648, %v652
        %v654 = vpack.c.bf16 %v645, %v645
        %v655 = vld [vmem:[%s4] sm:$0xf]
        %v656 = vld [vmem:[%s4 + $0x4] sm:$0xf]
        %v657 = vld [vmem:[%s5] sm:$0x1]
        %v659 = vlaneseq
        %v660 = vshrl.u32 %v659, 7
        %v661 = vsub.s32 0, %v660
        %v662 = vrot.slane %v657, %v661
        %665 = vrot.lane.b32.xlu0 %v654, 124
        %v666 = vpop.permute.xlu0 %665
        %v669 = vunpack.c.l.b16 %v655
        %v670 = vunpack.c.l.b16 %v656
        %v671 = vpack.c.b16 %v670, %v669
        %vm673 = vcmask 130048
        %v675 = vsel %vm673, %v666, 0
        %677 = vmatprep.subr.bf16.mxu0 0
        %678 = vmatpush1.bf16.msra.mxu0 %v671
        %679 = vmatprep.subr.bf16.mxu0 0
        %680 = vmatpush1.bf16.msra.mxu0 0
        %681 = vmatprep.subr.bf16.mxu0 0
        %682 = vmatpush1.bf16.msra.mxu0 0
        %683 = vmatprep.subr.bf16.mxu0 0
        %684 = vmatpush1.bf16.msra.mxu0 0
        %685 = vmatprep.subr.bf16.mxu0 0
        %686 = vmatpush1.bf16.msra.mxu0 0
        %687 = vmatprep.subr.bf16.mxu0 0
        %688 = vmatpush1.bf16.msra.mxu0 0
        %689 = vmatprep.subr.bf16.mxu0 0
        %690 = vmatpush1.bf16.msra.mxu0 0
        %691 = vmatprep.subr.bf16.mxu0 0
        %692 = vmatpush1.bf16.msra.mxu0 0
        %693 = vmatprep.subr.bf16.mxu0 0
        %694 = vmatpush1.bf16.msra.mxu0 0
        %695 = vmatprep.subr.bf16.mxu0 0
        %696 = vmatpush1.bf16.msra.mxu0 0
        %697 = vmatprep.subr.bf16.mxu0 0
        %698 = vmatpush1.bf16.msra.mxu0 0
        %699 = vmatprep.subr.bf16.mxu0 0
        %700 = vmatpush1.bf16.msra.mxu0 0
        %701 = vmatprep.subr.bf16.mxu0 0
        %702 = vmatpush1.bf16.msra.mxu0 0
        %703 = vmatprep.subr.bf16.mxu0 0
        %704 = vmatpush1.bf16.msra.mxu0 0
        %705 = vmatprep.subr.bf16.mxu0 0
        %706 = vmatpush1.bf16.msra.mxu0 0
        %707 = vmatprep.subr.bf16.mxu0 0
        %708 = vmatpush1.bf16.msra.mxu0 0
        %709 = vmatprep.mubr.bf16.mxu0 0
        %710 = vmatmul.mubr.bf16.gmra.mrb[0].mxu0 %v675
        %v711 = vpop.f32.mrb[0].mxu0
        %v712 = vadd.f32 %v662, %v711
        %v713 = vpop.f32.mrb[0].mxu0
        %v714 = vpop.f32.mrb[0].mxu0
        %v715 = vpop.f32.mrb[0].mxu0
        %716 = vdwg.mxu0
        %v717 = vxor.u32 %v712, 2147483648
        %v718 = vmul.f32 %v717, 1.442695
        %v719 = vpow.pop %v718
        %v720 = vadd.f32 %v719, 1.0
        %v721 = vrcp.pop %v720
        %v722 = vmul.f32 1.0, %v721
        %v723 = vpack.c.bf16 %v722, %v722
        %v724 = vld [vmem:[#allocation8] sm:$0xf]
        %v725 = vld [vmem:[#allocation8 + $0x4] sm:$0xf]
        %v726 = vld [vmem:[#allocation8 + $0x8] sm:$0xf]
        %v727 = vld [vmem:[#allocation8 + $0xc] sm:$0xf]
        %v728 = vld [vmem:[#allocation8 + $0x10] sm:$0xf]
        %v729 = vld [vmem:[#allocation8 + $0x14] sm:$0xf]
        %v730 = vld [vmem:[#allocation8 + $0x18] sm:$0xf]
        %v731 = vld [vmem:[#allocation8 + $0x1c] sm:$0xf]
        %v732 = vld [vmem:[#allocation8 + $0x20] sm:$0xf]
        %v733 = vld [vmem:[#allocation8 + $0x24] sm:$0xf]
        %v734 = vld [vmem:[#allocation8 + $0x28] sm:$0xf]
        %v735 = vld [vmem:[#allocation8 + $0x2c] sm:$0xf]
        %v736 = vld [vmem:[#allocation8 + $0x30] sm:$0x3]
        %v737 = vld [vmem:[%s7] sm:$0x1]
        %v739 = vlaneseq
        %v740 = vshrl.u32 %v739, 7
        %v741 = vsub.s32 0, %v740
        %v742 = vrot.slane %v737, %v741
        %v757 = vunpack.c.l.b16 %v724
        %v758 = vunpack.c.l.b16 %v725
        %v759 = vunpack.c.l.b16 %v726
        %v760 = vunpack.c.l.b16 %v727
        %v761 = vunpack.c.l.b16 %v728
        %v762 = vunpack.c.l.b16 %v729
        %v763 = vunpack.c.l.b16 %v730
        %v764 = vunpack.c.l.b16 %v731
        %v765 = vunpack.c.l.b16 %v732
        %v766 = vunpack.c.l.b16 %v733
        %v767 = vunpack.c.l.b16 %v734
        %v768 = vunpack.c.l.b16 %v735
        %v769 = vunpack.c.l.b16 %v736
        %v770 = vpack.c.b16 %v758, %v757
        %v771 = vpack.c.b16 %v760, %v759
        %v772 = vpack.c.b16 %v762, %v761
        %v773 = vpack.c.b16 %v764, %v763
        %v774 = vpack.c.b16 %v766, %v765
        %v775 = vpack.c.b16 %v768, %v767
        %v776 = vpack.c.b16 %v769, %v769
        %vm783 = vcmask 818176
        %v785 = vsel %vm783, %v723, 0
        %vm787 = vcmask 1041408
        %v789 = vsel %vm787, %v776, 0
        %791 = vmatprep.subr.bf16.mxu0 0
        %792 = vmatpush1.bf16.msra.mxu0 %v770
        %793 = vmatprep.subr.bf16.mxu0 0
        %794 = vmatpush1.bf16.msra.mxu0 %v771
        %795 = vmatprep.subr.bf16.mxu0 0
        %796 = vmatpush1.bf16.msra.mxu0 %v772
        %797 = vmatprep.subr.bf16.mxu0 0
        %798 = vmatpush1.bf16.msra.mxu0 %v773
        %799 = vmatprep.subr.bf16.mxu0 0
        %800 = vmatpush1.bf16.msra.mxu0 %v774
        %801 = vmatprep.subr.bf16.mxu0 0
        %802 = vmatpush1.bf16.msra.mxu0 %v775
        %803 = vmatprep.subr.bf16.mxu0 0
        %804 = vmatpush1.bf16.msra.mxu0 %v789
        %805 = vmatprep.subr.bf16.mxu0 0
        %806 = vmatpush1.bf16.msra.mxu0 0
        %807 = vmatprep.subr.bf16.mxu0 0
        %808 = vmatpush1.bf16.msra.mxu0 0
        %809 = vmatprep.subr.bf16.mxu0 0
        %810 = vmatpush1.bf16.msra.mxu0 0
        %811 = vmatprep.subr.bf16.mxu0 0
        %812 = vmatpush1.bf16.msra.mxu0 0
        %813 = vmatprep.subr.bf16.mxu0 0
        %814 = vmatpush1.bf16.msra.mxu0 0
        %815 = vmatprep.subr.bf16.mxu0 0
        %816 = vmatpush1.bf16.msra.mxu0 0
        %817 = vmatprep.subr.bf16.mxu0 0
        %818 = vmatpush1.bf16.msra.mxu0 0
        %819 = vmatprep.subr.bf16.mxu0 0
        %820 = vmatpush1.bf16.msra.mxu0 0
        %821 = vmatprep.subr.bf16.mxu0 0
        %822 = vmatpush1.bf16.msra.mxu0 0
        %823 = vmatprep.mubr.bf16.mxu0 0
        %824 = vmatmul.mubr.bf16.gmra.mrb[0].mxu0 %v785
        %v825 = vpop.f32.mrb[0].mxu0
        %v826 = vadd.f32 %v742, %v825
        %v827 = vpop.f32.mrb[0].mxu0
        %v828 = vpop.f32.mrb[0].mxu0
        %v829 = vpop.f32.mrb[0].mxu0
        %830 = vdwg.mxu0
        %v831 = vxor.u32 %v826, 2147483648
        %v832 = vmul.f32 %v831, 1.442695
        %v833 = vpow.pop %v832
        %v834 = vadd.f32 %v833, 1.0
        %v835 = vrcp.pop %v834
        %v836 = vmul.f32 1.0, %v835
        %v837 = vpack.c.bf16 %v836, %v836
        %v838 = vld [vmem:[%s8] sm:$0xf]
        %v839 = vld [vmem:[%s8 + $0x4] sm:$0xf]
        %v840 = vld [vmem:[%s8 + $0x8] sm:$0xf]
        %v841 = vld [vmem:[%s8 + $0xc] sm:$0xf]
        %v842 = vld [vmem:[%s8 + $0x10] sm:$0xf]
        %v843 = vld [vmem:[%s8 + $0x14] sm:$0xf]
        %v844 = vld [vmem:[%s8 + $0x18] sm:$0xf]
        %v845 = vld [vmem:[%s8 + $0x1c] sm:$0xf]
        %v846 = vld [vmem:[%s8 + $0x20] sm:$0xf]
        %v847 = vld [vmem:[%s8 + $0x24] sm:$0xf]
        %v848 = vld [vmem:[%s8 + $0x28] sm:$0xf]
        %v849 = vld [vmem:[%s8 + $0x2c] sm:$0xf]
        %v850 = vld [vmem:[%s8 + $0x30] sm:$0x3]
        %v851 = vld [vmem:[%s9] sm:$0x1]
        %v853 = vlaneseq
        %v854 = vshrl.u32 %v853, 7
        %v855 = vsub.s32 0, %v854
        %v856 = vrot.slane %v851, %v855
        %v871 = vunpack.c.l.b16 %v838
        %v872 = vunpack.c.l.b16 %v839
        %v873 = vunpack.c.l.b16 %v840
        %v874 = vunpack.c.l.b16 %v841
        %v875 = vunpack.c.l.b16 %v842
        %v876 = vunpack.c.l.b16 %v843
        %v877 = vunpack.c.l.b16 %v844
        %v878 = vunpack.c.l.b16 %v845
        %v879 = vunpack.c.l.b16 %v846
        %v880 = vunpack.c.l.b16 %v847
        %v881 = vunpack.c.l.b16 %v848
        %v882 = vunpack.c.l.b16 %v849
        %v883 = vunpack.c.l.b16 %v850
        %v884 = vpack.c.b16 %v872, %v871
        %v885 = vpack.c.b16 %v874, %v873
        %v886 = vpack.c.b16 %v876, %v875
        %v887 = vpack.c.b16 %v878, %v877
        %v888 = vpack.c.b16 %v880, %v879
        %v889 = vpack.c.b16 %v882, %v881
        %v890 = vpack.c.b16 %v883, %v883
        %v898 = vsel %vm783, %v837, 0
        %v901 = vsel %vm787, %v890, 0
        %903 = vmatprep.subr.bf16.mxu0 0
        %904 = vmatpush1.bf16.msra.mxu0 %v884
        %905 = vmatprep.subr.bf16.mxu0 0
        %906 = vmatpush1.bf16.msra.mxu0 %v885
        %907 = vmatprep.subr.bf16.mxu0 0
        %908 = vmatpush1.bf16.msra.mxu0 %v886
        %909 = vmatprep.subr.bf16.mxu0 0
        %910 = vmatpush1.bf16.msra.mxu0 %v887
        %911 = vmatprep.subr.bf16.mxu0 0
        %912 = vmatpush1.bf16.msra.mxu0 %v888
        %913 = vmatprep.subr.bf16.mxu0 0
        %914 = vmatpush1.bf16.msra.mxu0 %v889
        %915 = vmatprep.subr.bf16.mxu0 0
        %916 = vmatpush1.bf16.msra.mxu0 %v901
        %917 = vmatprep.subr.bf16.mxu0 0
        %918 = vmatpush1.bf16.msra.mxu0 0
        %919 = vmatprep.subr.bf16.mxu0 0
        %920 = vmatpush1.bf16.msra.mxu0 0
        %921 = vmatprep.subr.bf16.mxu0 0
        %922 = vmatpush1.bf16.msra.mxu0 0
        %923 = vmatprep.subr.bf16.mxu0 0
        %924 = vmatpush1.bf16.msra.mxu0 0
        %925 = vmatprep.subr.bf16.mxu0 0
        %926 = vmatpush1.bf16.msra.mxu0 0
        %927 = vmatprep.subr.bf16.mxu0 0
        %928 = vmatpush1.bf16.msra.mxu0 0
        %929 = vmatprep.subr.bf16.mxu0 0
        %930 = vmatpush1.bf16.msra.mxu0 0
        %931 = vmatprep.subr.bf16.mxu0 0
        %932 = vmatpush1.bf16.msra.mxu0 0
        %933 = vmatprep.subr.bf16.mxu0 0
        %934 = vmatpush1.bf16.msra.mxu0 0
        %935 = vmatprep.mubr.bf16.mxu0 0
        %936 = vmatmul.mubr.bf16.gmra.mrb[0].mxu0 %v898
        %v937 = vpop.f32.mrb[0].mxu0
        %v938 = vadd.f32 %v856, %v937
        %v939 = vpop.f32.mrb[0].mxu0
        %v940 = vpop.f32.mrb[0].mxu0
        %v941 = vpop.f32.mrb[0].mxu0
        %942 = vdwg.mxu0
        %v943 = vsel %vm673, %v938, -inf
        %944 = vmax.xlane.f32.xlu0 %v943
        %v945 = vpop.xlane.xlu0 %944
        %v946 = vsub.f32 %v938, %v945
        %v947 = vmul.f32 %v946, 1.442695
        %v948 = vpow.pop %v947
        %v949 = vsel %vm673, %v948, 0.0
        %950 = vadd.xlane.f32.xlu0 %v949
        %v951 = vpop.xlane.xlu0 %950
        %v952 = vrcp.pop %v951
        %v953 = vmul.f32 %v948, %v952
        %954 = vst.msk [vmem:[%s624] sm:$0xff] %vm673, %v953
        %956 = vrot.lane.b32.xlu0 %v953, 4
        %v957 = vpop.permute.xlu0 %956
        %v959 = vmul.f32 %v645, %v957
        %v960 = vld [vmem:[#allocation2] sm:$0xff]
        %v961 = vtanh.pop %v960
        %v962 = vpack.c.bf16 %v653, %v653
        %v963 = vld [vmem:[%s10] sm:$0x3]
        %v964 = vpack.c.bf16 %v959, %v959
        %v965 = vld [vmem:[%s11] sm:$0xf]
        %v966 = vld [vmem:[%s11 + $0x4] sm:$0xf]
        %968 = vrot.lane.b32.xlu0 %v964, 124
        %v969 = vpop.permute.xlu0 %968
        %v972 = vunpack.c.l.b16 %v965
        %v973 = vunpack.c.l.b16 %v966
        %v974 = vpack.c.b16 %v973, %v972
        %v977 = vsel %vm673, %v969, 0
        %979 = vmatprep.subr.bf16.mxu0 0
        %980 = vmatpush1.bf16.msra.mxu0 %v974
        %981 = vmatprep.subr.bf16.mxu0 0
        %982 = vmatpush1.bf16.msra.mxu0 0
        %983 = vmatprep.subr.bf16.mxu0 0
        %984 = vmatpush1.bf16.msra.mxu0 0
        %985 = vmatprep.subr.bf16.mxu0 0
        %986 = vmatpush1.bf16.msra.mxu0 0
        %987 = vmatprep.subr.bf16.mxu0 0
        %988 = vmatpush1.bf16.msra.mxu0 0
        %989 = vmatprep.subr.bf16.mxu0 0
        %990 = vmatpush1.bf16.msra.mxu0 0
        %991 = vmatprep.subr.bf16.mxu0 0
        %992 = vmatpush1.bf16.msra.mxu0 0
        %993 = vmatprep.subr.bf16.mxu0 0
        %994 = vmatpush1.bf16.msra.mxu0 0
        %995 = vmatprep.subr.bf16.mxu0 0
        %996 = vmatpush1.bf16.msra.mxu0 0
        %997 = vmatprep.subr.bf16.mxu0 0
        %998 = vmatpush1.bf16.msra.mxu0 0
        %999 = vmatprep.subr.bf16.mxu0 0
        %1000 = vmatpush1.bf16.msra.mxu0 0
        %1001 = vmatprep.subr.bf16.mxu0 0
        %1002 = vmatpush1.bf16.msra.mxu0 0
        %1003 = vmatprep.subr.bf16.mxu0 0
        %1004 = vmatpush1.bf16.msra.mxu0 0
        %1005 = vmatprep.subr.bf16.mxu0 0
        %1006 = vmatpush1.bf16.msra.mxu0 0
        %1007 = vmatprep.subr.bf16.mxu0 0
        %1008 = vmatpush1.bf16.msra.mxu0 0
        %1009 = vmatprep.subr.bf16.mxu0 0
        %1010 = vmatpush1.bf16.msra.mxu0 0
        %1011 = vmatprep.mubr.bf16.mxu0 0
        %1012 = vmatmul.mubr.bf16.gmra.mrb[0].mxu0 %v977
        %v1013 = vpop.f32.mrb[0].mxu0
        %v1014 = vadd.f32 0.0, %v1013
        %v1015 = vpop.f32.mrb[0].mxu0
        %v1016 = vpop.f32.mrb[0].mxu0
        %v1017 = vpop.f32.mrb[0].mxu0
        %1018 = vdwg.mxu0
        %vm1019 = vcmask 31744
        %v1021 = vsel %vm1019, %v962, 0
        %v1024 = vsel %vm787, %v963, 0
        %1026 = vmatprep.subr.bf16.mxu0 0
        %1027 = vmatpush1.bf16.msra.mxu0 %v1024
        %1028 = vmatprep.subr.bf16.mxu0 0
        %1029 = vmatpush1.bf16.msra.mxu0 0
        %1030 = vmatprep.subr.bf16.mxu0 0
        %1031 = vmatpush1.bf16.msra.mxu0 0
        %1032 = vmatprep.subr.bf16.mxu0 0
        %1033 = vmatpush1.bf16.msra.mxu0 0
        %1034 = vmatprep.subr.bf16.mxu0 0
        %1035 = vmatpush1.bf16.msra.mxu0 0
        %1036 = vmatprep.subr.bf16.mxu0 0
        %1037 = vmatpush1.bf16.msra.mxu0 0
        %1038 = vmatprep.subr.bf16.mxu0 0
        %1039 = vmatpush1.bf16.msra.mxu0 0
        %1040 = vmatprep.subr.bf16.mxu0 0
        %1041 = vmatpush1.bf16.msra.mxu0 0
        %1042 = vmatprep.subr.bf16.mxu0 0
        %1043 = vmatpush1.bf16.msra.mxu0 0
        %1044 = vmatprep.subr.bf16.mxu0 0
        %1045 = vmatpush1.bf16.msra.mxu0 0
        %1046 = vmatprep.subr.bf16.mxu0 0
        %1047 = vmatpush1.bf16.msra.mxu0 0
        %1048 = vmatprep.subr.bf16.mxu0 0
        %1049 = vmatpush1.bf16.msra.mxu0 0
        %1050 = vmatprep.subr.bf16.mxu0 0
        %1051 = vmatpush1.bf16.msra.mxu0 0
        %1052 = vmatprep.subr.bf16.mxu0 0
        %1053 = vmatpush1.bf16.msra.mxu0 0
        %1054 = vmatprep.subr.bf16.mxu0 0
        %1055 = vmatpush1.bf16.msra.mxu0 0
        %1056 = vmatprep.subr.bf16.mxu0 0
        %1057 = vmatpush1.bf16.msra.mxu0 0
        %1058 = vmatprep.mubr.bf16.mxu0 0
        %1059 = vmatmul.mubr.bf16.gmra.mrb[0].mxu0 %v1021
        %v1060 = vpop.f32.mrb[0].mxu0
        %v1061 = vadd.f32 %v1014, %v1060
        %v1062 = vpop.f32.mrb[0].mxu0
        %v1063 = vpop.f32.mrb[0].mxu0
        %v1064 = vpop.f32.mrb[0].mxu0
        %1065 = vdwg.mxu0
        %v1066 = vpack.c.bf16 %v961, %v961
        %v1067 = vld [vmem:[%s12] sm:$0xf]
        %v1068 = vld [vmem:[%s12 + $0x4] sm:$0xf]
        %v1069 = vld [vmem:[%s12 + $0x8] sm:$0xf]
        %v1070 = vld [vmem:[%s12 + $0xc] sm:$0xf]
        %v1071 = vld [vmem:[%s12 + $0x10] sm:$0xf]
        %v1072 = vld [vmem:[%s12 + $0x14] sm:$0xf]
        %v1073 = vld [vmem:[%s12 + $0x18] sm:$0xf]
        %v1074 = vld [vmem:[%s12 + $0x1c] sm:$0xf]
        %v1075 = vld [vmem:[%s12 + $0x20] sm:$0xf]
        %v1076 = vld [vmem:[%s12 + $0x24] sm:$0xf]
        %v1077 = vld [vmem:[%s12 + $0x28] sm:$0xf]
        %v1078 = vld [vmem:[%s12 + $0x2c] sm:$0xf]
        %v1079 = vld [vmem:[%s12 + $0x30] sm:$0xf]
        %v1080 = vld [vmem:[%s12 + $0x34] sm:$0xf]
        %v1081 = vld [vmem:[%s12 + $0x38] sm:$0xf]
        %v1082 = vld [vmem:[%s12 + $0x3c] sm:$0xf]
        %v1099 = vunpack.c.l.b16 %v1067
        %v1100 = vunpack.c.l.b16 %v1068
        %v1101 = vunpack.c.l.b16 %v1069
        %v1102 = vunpack.c.l.b16 %v1070
        %v1103 = vunpack.c.l.b16 %v1071
        %v1104 = vunpack.c.l.b16 %v1072
        %v1105 = vunpack.c.l.b16 %v1073
        %v1106 = vunpack.c.l.b16 %v1074
        %v1107 = vunpack.c.l.b16 %v1075
        %v1108 = vunpack.c.l.b16 %v1076
        %v1109 = vunpack.c.l.b16 %v1077
        %v1110 = vunpack.c.l.b16 %v1078
        %v1111 = vunpack.c.l.b16 %v1079
        %v1112 = vunpack.c.l.b16 %v1080
        %v1113 = vunpack.c.l.b16 %v1081
        %v1114 = vunpack.c.l.b16 %v1082
        %v1115 = vpack.c.b16 %v1100, %v1099
        %v1116 = vpack.c.b16 %v1102, %v1101
        %v1117 = vpack.c.b16 %v1104, %v1103
        %v1118 = vpack.c.b16 %v1106, %v1105
        %v1119 = vpack.c.b16 %v1108, %v1107
        %v1120 = vpack.c.b16 %v1110, %v1109
        %v1121 = vpack.c.b16 %v1112, %v1111
        %v1122 = vpack.c.b16 %v1114, %v1113
        %1131 = vmatprep.subr.bf16.mxu0 0
        %1132 = vmatpush1.bf16.msra.mxu0 %v1115
        %1133 = vmatprep.subr.bf16.mxu0 0
        %1134 = vmatpush1.bf16.msra.mxu0 %v1116
        %1135 = vmatprep.subr.bf16.mxu0 0
        %1136 = vmatpush1.bf16.msra.mxu0 %v1117
        %1137 = vmatprep.subr.bf16.mxu0 0
        %1138 = vmatpush1.bf16.msra.mxu0 %v1118
        %1139 = vmatprep.subr.bf16.mxu0 0
        %1140 = vmatpush1.bf16.msra.mxu0 %v1119
        %1141 = vmatprep.subr.bf16.mxu0 0
        %1142 = vmatpush1.bf16.msra.mxu0 %v1120
        %1143 = vmatprep.subr.bf16.mxu0 0
        %1144 = vmatpush1.bf16.msra.mxu0 %v1121
        %1145 = vmatprep.subr.bf16.mxu0 0
        %1146 = vmatpush1.bf16.msra.mxu0 %v1122
        %1147 = vmatprep.subr.bf16.mxu0 0
        %1148 = vmatpush1.bf16.msra.mxu0 0
        %1149 = vmatprep.subr.bf16.mxu0 0
        %1150 = vmatpush1.bf16.msra.mxu0 0
        %1151 = vmatprep.subr.bf16.mxu0 0
        %1152 = vmatpush1.bf16.msra.mxu0 0
        %1153 = vmatprep.subr.bf16.mxu0 0
        %1154 = vmatpush1.bf16.msra.mxu0 0
        %1155 = vmatprep.subr.bf16.mxu0 0
        %1156 = vmatpush1.bf16.msra.mxu0 0
        %1157 = vmatprep.subr.bf16.mxu0 0
        %1158 = vmatpush1.bf16.msra.mxu0 0
        %1159 = vmatprep.subr.bf16.mxu0 0
        %1160 = vmatpush1.bf16.msra.mxu0 0
        %1161 = vmatprep.subr.bf16.mxu0 0
        %1162 = vmatpush1.bf16.msra.mxu0 0
        %1163 = vmatprep.mubr.bf16.mxu0 0
        %1164 = vmatmul.mubr.bf16.gmra.mrb[0].mxu0 %v1066
        %v1165 = vpop.f32.mrb[0].mxu0
        %v1166 = vadd.f32 0.0, %v1165
        %v1167 = vpop.f32.mrb[0].mxu0
        %v1168 = vpop.f32.mrb[0].mxu0
        %v1169 = vpop.f32.mrb[0].mxu0
        %1170 = vdwg.mxu0
        %v1171 = vadd.f32 %v1061, %v1166
        %v1172 = vld [vmem:[%s13] sm:$0x1]
        %v1174 = vlaneseq
        %v1175 = vshrl.u32 %v1174, 7
        %v1176 = vsub.s32 0, %v1175
        %v1177 = vrot.slane %v1172, %v1176
        %v1179 = vadd.f32 %v1171, %v1177
        %v1180 = vld [vmem:[%s14] sm:$0x1]
        %v1181 = vsub.f32 1.0, %v1180
        %v1183 = vlaneseq
        %v1184 = vshrl.u32 %v1183, 7
        %v1185 = vsub.s32 0, %v1184
        %v1186 = vrot.slane %v1181, %v1185
        %v1188 = vmul.f32 %v1186, %v960
        %v1190 = vlaneseq
        %v1191 = vshrl.u32 %v1190, 7
        %v1192 = vsub.s32 0, %v1191
        %v1193 = vrot.slane %v1180, %v1192
        %v1195 = vmul.f32 %v1193, %v1179
        %v1196 = vadd.f32 %v1188, %v1195
        %v1197 = vtanh.pop %v1196
        %v1198 = vpack.c.bf16 %v1197, %v1197
        %v1199 = vld [vmem:[%s15] sm:$0xf]
        %v1200 = vld [vmem:[%s15 + $0x4] sm:$0xf]
        %v1201 = vld [vmem:[%s15 + $0x8] sm:$0xf]
        %v1202 = vld [vmem:[%s15 + $0xc] sm:$0xf]
        %v1203 = vld [vmem:[%s15 + $0x10] sm:$0xf]
        %v1204 = vld [vmem:[%s15 + $0x14] sm:$0xf]
        %v1205 = vld [vmem:[%s15 + $0x18] sm:$0xf]
        %v1206 = vld [vmem:[%s15 + $0x1c] sm:$0xf]
        %v1207 = vld [vmem:[%s15 + $0x20] sm:$0xf]
        %v1208 = vld [vmem:[%s15 + $0x24] sm:$0xf]
        %v1209 = vld [vmem:[%s15 + $0x28] sm:$0xf]
        %v1210 = vld [vmem:[%s15 + $0x2c] sm:$0xf]
        %v1211 = vld [vmem:[%s15 + $0x30] sm:$0xf]
        %v1212 = vld [vmem:[%s15 + $0x34] sm:$0xf]
        %v1213 = vld [vmem:[%s15 + $0x38] sm:$0xf]
        %v1214 = vld [vmem:[%s15 + $0x3c] sm:$0xf]
        %v1215 = vld [vmem:[%s16] sm:$0x1]
        %v1217 = vlaneseq
        %v1218 = vshrl.u32 %v1217, 7
        %v1219 = vsub.s32 0, %v1218
        %v1220 = vrot.slane %v1215, %v1219
        %v1238 = vunpack.c.l.b16 %v1199
        %v1239 = vunpack.c.l.b16 %v1200
        %v1240 = vunpack.c.l.b16 %v1201
        %v1241 = vunpack.c.l.b16 %v1202
        %v1242 = vunpack.c.l.b16 %v1203
        %v1243 = vunpack.c.l.b16 %v1204
        %v1244 = vunpack.c.l.b16 %v1205
        %v1245 = vunpack.c.l.b16 %v1206
        %v1246 = vunpack.c.l.b16 %v1207
        %v1247 = vunpack.c.l.b16 %v1208
        %v1248 = vunpack.c.l.b16 %v1209
        %v1249 = vunpack.c.l.b16 %v1210
        %v1250 = vunpack.c.l.b16 %v1211
        %v1251 = vunpack.c.l.b16 %v1212
        %v1252 = vunpack.c.l.b16 %v1213
        %v1253 = vunpack.c.l.b16 %v1214
        %v1254 = vpack.c.b16 %v1239, %v1238
        %v1255 = vpack.c.b16 %v1241, %v1240
        %v1256 = vpack.c.b16 %v1243, %v1242
        %v1257 = vpack.c.b16 %v1245, %v1244
        %v1258 = vpack.c.b16 %v1247, %v1246
        %v1259 = vpack.c.b16 %v1249, %v1248
        %v1260 = vpack.c.b16 %v1251, %v1250
        %v1261 = vpack.c.b16 %v1253, %v1252
        %1270 = vmatprep.subr.bf16.mxu0 0
        %1271 = vmatpush1.bf16.msra.mxu0 %v1254
        %1272 = vmatprep.subr.bf16.mxu0 0
        %1273 = vmatpush1.bf16.msra.mxu0 %v1255
        %1274 = vmatprep.subr.bf16.mxu0 0
        %1275 = vmatpush1.bf16.msra.mxu0 %v1256
        %1276 = vmatprep.subr.bf16.mxu0 0
        %1277 = vmatpush1.bf16.msra.mxu0 %v1257
        %1278 = vmatprep.subr.bf16.mxu0 0
        %1279 = vmatpush1.bf16.msra.mxu0 %v1258
        %1280 = vmatprep.subr.bf16.mxu0 0
        %1281 = vmatpush1.bf16.msra.mxu0 %v1259
        %1282 = vmatprep.subr.bf16.mxu0 0
        %1283 = vmatpush1.bf16.msra.mxu0 %v1260
        %1284 = vmatprep.subr.bf16.mxu0 0
        %1285 = vmatpush1.bf16.msra.mxu0 %v1261
        %1286 = vmatprep.subr.bf16.mxu0 0
        %1287 = vmatpush1.bf16.msra.mxu0 0
        %1288 = vmatprep.subr.bf16.mxu0 0
        %1289 = vmatpush1.bf16.msra.mxu0 0
        %1290 = vmatprep.subr.bf16.mxu0 0
        %1291 = vmatpush1.bf16.msra.mxu0 0
        %1292 = vmatprep.subr.bf16.mxu0 0
        %1293 = vmatpush1.bf16.msra.mxu0 0
        %1294 = vmatprep.subr.bf16.mxu0 0
        %1295 = vmatpush1.bf16.msra.mxu0 0
        %1296 = vmatprep.subr.bf16.mxu0 0
        %1297 = vmatpush1.bf16.msra.mxu0 0
        %1298 = vmatprep.subr.bf16.mxu0 0
        %1299 = vmatpush1.bf16.msra.mxu0 0
        %1300 = vmatprep.subr.bf16.mxu0 0
        %1301 = vmatpush1.bf16.msra.mxu0 0
        %1302 = vmatprep.mubr.bf16.mxu0 0
        %1303 = vmatmul.mubr.bf16.gmra.mrb[0].mxu0 %v1198
        %v1304 = vpop.f32.mrb[0].mxu0
        %v1305 = vadd.f32 %v1220, %v1304
        %v1306 = vpop.f32.mrb[0].mxu0
        %v1307 = vpop.f32.mrb[0].mxu0
        %v1308 = vpop.f32.mrb[0].mxu0
        %1309 = vdwg.mxu0
        %v1310 = vtanh.pop %v1305
        %1311 = vst.msk [vmem:[%s634] sm:$0xff] %vm1019, %v1310
        %1312 = vst [vmem:[#allocation2] sm:$0xff] %v1196
        %1313 = vst.msk [vmem:[#allocation3] sm:$0xff] %vm1019, %v1310
        %p1314 = scmp.eq.s32.totalorder %s36, 7
        // Predicated region
        $region101: #{_run_seq.1} parent=87 // pred_check
          %p1315 = pneg %p1314
        $region102: #{_run_seq.1} parent=87 // pred_check_branch
          %1317 = sbr.rel (%p1315) target = $region104
        $region103: #{_run_seq.1} parent=87 // pred_region
          %1318 = vst [vmem:[%s19] sm:$0xff] %v1196
        $region104: #{_run_seq.1} parent=87 // pred_fallthru
          _
        %p1319 = scmp.lt.s32.totalorder %s36, 7
        %s1320 = scalar_select %p1319, %s36, 7
        %s1321 = smul.addr %s1320, 8
        %s1322 = scalar_lea.vmem %s17, %s1321
        %s1323 = sand.u32 %s432, 1
        %s1324 = scalar_lea.sflag [#allocation6], %s1323
        %s1325 = sand.u32 %s432, 1
        %s1326 = smul.addr %s1325, 8
        %s1327 = scalar_lea.vmem [#allocation9], %s1326
        // Predicated region
        $region105: #{_run_seq.1} parent=87 // pred_check
          %p1328 = pneg %p416
        $region106: #{_run_seq.1} parent=87 // pred_check_branch
          %1330 = sbr.rel (%p1328) target = $region108
        $region107: #{_run_seq.1} parent=87 // pred_region
          _
        $region108: #{_run_seq.1} parent=87 // pred_fallthru
          _
        // Predicated region
        $region109: #{_run_seq.1} parent=87 // pred_check
          %p1331 = pneg %p442
        $region110: #{_run_seq.1} parent=87 // pred_check_branch
          %1333 = sbr.rel (%p1331) target = $region112
        $region111: #{_run_seq.1} parent=87 // pred_region
          %s1335 = ssub.s32 128, 128
          %1336 = vsyncadd %s1324, %s1335
          %s1337 = smul.addr %s36, 128
          %s1338 = scalar_lea.hbm %s18, %s1337
          %s1340 = sshll.u32 %s1327, 4
          %s1341 = int_to_ptr.vmem [resolvable:$true] %s1340
          %1343 = dma.vmem_to_hbm [thread:$0]  %s1341, 128, %s1338, %s1324
        $region112: #{_run_seq.1} parent=87 // pred_fallthru
          _
        // Predicated region
        $region113: #{_run_seq.1} parent=87 // pred_check
          %p1344 = pneg %p463
        $region114: #{_run_seq.1} parent=87 // pred_check_branch
          %1346 = sbr.rel (%p1344) target = $region116
        $region115: #{_run_seq.1} parent=87 // pred_region
          _
        $region116: #{_run_seq.1} parent=87 // pred_fallthru
          _
        // Predicated region
        $region117: #{_run_seq.1} parent=87 // pred_check
          %p1347 = pneg %p463
        $region118: #{_run_seq.1} parent=87 // pred_check_branch
          %1349 = sbr.rel (%p1347) target = $region120
        $region119: #{_run_seq.1} parent=87 // pred_region
          _
        $region120: #{_run_seq.1} parent=87 // pred_fallthru
          _
      $region88: #{_run_seq.1} parent=5 // pred_fallthru
        _
      %p1350 = scmp.le.s32.totalorder 2, %s31
      // Predicated region
      $region121: #{_run_seq.1} parent=5 // pred_check
        %p1351 = pneg %p1350
      $region122: #{_run_seq.1} parent=5 // pred_check_branch
        %1353 = sbr.rel (%p1351) target = $region124
      $region123: #{_run_seq.1} parent=5 // pred_region
        %s1354 = ssub.s32 %s31, 2
        // Predicated region
        $region125: #{_run_seq.1} parent=123 // pred_check
          %p1355 = pneg %p422
        $region126: #{_run_seq.1} parent=123 // pred_check_branch
          %1357 = sbr.rel (%p1355) target = $region128
        $region127: #{_run_seq.1} parent=123 // pred_region
          %p1358 = scmp.lt.s32.totalorder %s37, 7
          %s1359 = scalar_select %p1358, %s37, 7
          %s1360 = smul.addr %s1359, 8
          %s1361 = scalar_lea.vmem %s17, %s1360
        $region128: #{_run_seq.1} parent=123 // pred_fallthru
          _
        // Predicated region
        $region129: #{_run_seq.1} parent=123 // pred_check
          %p1362 = pneg %p448
        $region130: #{_run_seq.1} parent=123 // pred_check_branch
          %1364 = sbr.rel (%p1362) target = $region132
        $region131: #{_run_seq.1} parent=123 // pred_region
          %s1365 = sand.u32 %s433, 1
          %s1366 = scalar_lea.sflag [#allocation6], %s1365
          %s1367 = sand.u32 %s433, 1
          %s1368 = smul.addr %s1367, 8
          %s1369 = scalar_lea.vmem [#allocation9], %s1368
          %1370 = dma.done %s1366, 128
        $region132: #{_run_seq.1} parent=123 // pred_fallthru
          _
      $region124: #{_run_seq.1} parent=5 // pred_fallthru
        _
    $region6: #{_run_seq.1} parent=1 // loop_footer
      %s35 = sadd.s32 1, %s31
    $region7: #{_run_seq.1} parent=1 // loop_footer_branch
      %30 = sbr.rel target = $region3
    $region8: #{_run_seq.1} parent=1 // loop_exit
      _
    %1371 = vsyncpa [#allocation5], 1
    %s1372 = scalar_lea.sflag [#allocation5], 1
    %1373 = vsyncpa %s1372, 1
    %1374 = vsyncpa [#allocation6], 1
    %s1375 = scalar_lea.sflag [#allocation6], 1
    %1376 = vsyncpa %s1375, 1
    %1377 = vsyncpa [#allocation7], 1
    %s1378 = scalar_lea.sflag [#allocation7], 1
    %1379 = vsyncpa %s1378, 1

</llo_original>
